<compile_context>
chip_gen: v7x
topology: tpu7x:2x2x1
jax: 0.10.0
libtpu: 0.0.40
codegen_flags: <defaults>
</compile_context>

<pallas_src>
import functools

import jax
import jax.numpy as jnp
import numpy as np
from jax import lax
from jax.experimental import pallas as pl
from jax.experimental.pallas import tpu as pltpu

_VMEM_BUDGET = 16 * 1024 * 1024   # per-step working-set target
_VMEM_LIMIT = 32 * 1024 * 1024    # scoped-VMEM limit (raises v5e's 16 MiB default)
_CAP_STATS = 8192                 # max lane tile for the stats pass
_CAP_APPLY = 4096                 # max lane tile for the whitening pass


def _lane_tile(lq, per_lane_bytes, cap):
    """Biggest lane tile (multiple of 128, or full dim) fitting the budget."""
    t = _VMEM_BUDGET // max(per_lane_bytes, 1)
    t = max(128, (t // 128) * 128)
    t = min(t, cap)
    return lq if lq <= t else t


def _sampling_mask(g_dim, hwp, lq, t, mod):
    """(G, 1, ceil(Lq/t)*t) bf16 mask: 1.0 where the element belongs to the
    stride-`mod` sample of the permuted (B, L) view and is in-bounds, else 0.
    Matches PyTorch's x1[:, ::stride**2] exactly (flat position
    p = k*G*HWp + g*HWp + hw, sampled when p % mod == 0)."""
    nq = -(-lq // t)
    lq_pad = nq * t
    q = jnp.arange(lq_pad, dtype=jnp.int32)
    k_idx = q // hwp
    hw = q - k_idx * hwp
    g_idx = jnp.arange(g_dim, dtype=jnp.int32)[:, None]
    # p % mod, computed with pre-reduced multipliers to stay well inside int32.
    pm = (k_idx[None, :] * ((g_dim * hwp) % mod)
          + g_idx * (hwp % mod) + hw[None, :]) % mod
    mask = (pm == 0) & (q[None, :] < lq)
    return mask.astype(jnp.bfloat16).reshape(g_dim, 1, lq_pad)


# ----------------------------------------------------------------------------
# Kernel 1: per-block sum + uncentered gram of the sampled view, accumulated
# over the (batch, lane-tile) grid, with normalization + Newton-Schulz
# inverse-sqrt fused into the final-step epilogue.
# ----------------------------------------------------------------------------
def _stats_isqrt_kernel(ls, eps, n_iter, x_ref, mask_ref, mean_ref, deconv_ref,
                        sum_acc, cov_acc):
    g = pl.program_id(0)
    i = pl.program_id(1)

    @pl.when(jnp.logical_and(g == 0, i == 0))
    def _():
        sum_acc[...] = jnp.zeros_like(sum_acc)
        cov_acc[...] = jnp.zeros_like(cov_acc)

    xf = x_ref[...].astype(jnp.float32)                       # (B, t)
    sel = mask_ref[...].astype(jnp.float32) > 0.0             # (1, t) -> bcast
    xm = jnp.where(sel, xf, 0.0)                              # NaN-safe masking

    sum_acc[...] += jnp.sum(xm, axis=1, keepdims=True)
    # Gram over the lane axis (no materialized transpose in the kernel body).
    cov_acc[...] += lax.dot_general(
        xm, xm, dimension_numbers=(((1,), (1,)), ((), ())),
        preferred_element_type=jnp.float32)

    @pl.when(jnp.logical_and(g == pl.num_programs(0) - 1,
                             i == pl.num_programs(1) - 1))
    def _():
        b = cov_acc.shape[0]
        r = lax.broadcasted_iota(jnp.int32, (b, b), 0)
        cix = lax.broadcasted_iota(jnp.int32, (b, b), 1)
        eye = (r == cix).astype(jnp.float32)

        inv_ls = 1.0 / float(ls)
        cov = cov_acc[...] * inv_ls + eps * eye
        norm_a = jnp.sqrt(jnp.sum(cov * cov))                 # Frobenius norm

        y = cov / norm_a
        z = eye
        for _ in range(n_iter):                               # static unroll
            t_ = 0.5 * (3.0 * eye -
                        jnp.dot(z, y, preferred_element_type=jnp.float32))
            y = jnp.dot(y, t_, preferred_element_type=jnp.float32)
            z = jnp.dot(t_, z, preferred_element_type=jnp.float32)

        mean_ref[...] = sum_acc[...] * inv_ls
        deconv_ref[...] = z * lax.rsqrt(norm_a)


def _stats_and_isqrt(xq, mask, ls, eps, n_iter, t):
    g_dim, b_dim, lq = xq.shape
    nq = pl.cdiv(lq, t)
    mean1, deconv = pl.pallas_call(
        functools.partial(_stats_isqrt_kernel, ls, eps, n_iter),
        out_shape=(jax.ShapeDtypeStruct((b_dim, 1), jnp.float32),
                   jax.ShapeDtypeStruct((b_dim, b_dim), jnp.float32)),
        grid=(g_dim, nq),
        in_specs=[pl.BlockSpec((None, b_dim, t), lambda g, i: (g, 0, i)),
                  pl.BlockSpec((None, 1, t), lambda g, i: (g, 0, i))],
        out_specs=(pl.BlockSpec((b_dim, 1), lambda g, i: (0, 0)),
                   pl.BlockSpec((b_dim, b_dim), lambda g, i: (0, 0))),
        scratch_shapes=[pltpu.VMEM((b_dim, 1), jnp.float32),
                        pltpu.VMEM((b_dim, b_dim), jnp.float32)],
        compiler_params=pltpu.CompilerParams(
            dimension_semantics=("arbitrary", "arbitrary"),
            vmem_limit_bytes=_VMEM_LIMIT),
    )(xq, mask)
    return mean1, deconv


# ----------------------------------------------------------------------------
# Kernel 2: whitening in the (G, B, K*HW) layout.
#   out[g, :, tile] = deconv @ x[g, :, tile] - bias     (bias = deconv @ mean1)
# ----------------------------------------------------------------------------
def _apply_kernel(deconv_ref, bias_ref, x_ref, o_ref):
    xf = x_ref[...].astype(jnp.float32)
    y = jnp.dot(deconv_ref[...], xf, preferred_element_type=jnp.float32)
    o_ref[...] = (y - bias_ref[...]).astype(o_ref.dtype)


def _apply_whitening(deconv, bias, xq, t):
    g_dim, b_dim, lq = xq.shape
    nq = pl.cdiv(lq, t)
    return pl.pallas_call(
        _apply_kernel,
        out_shape=jax.ShapeDtypeStruct((g_dim, b_dim, lq), xq.dtype),
        grid=(g_dim, nq),
        in_specs=[pl.BlockSpec((b_dim, b_dim), lambda g, i: (0, 0)),
                  pl.BlockSpec((b_dim, 1), lambda g, i: (0, 0)),
                  pl.BlockSpec((None, b_dim, t), lambda g, i: (g, 0, i))],
        out_specs=pl.BlockSpec((None, b_dim, t), lambda g, i: (g, 0, i)),
        compiler_params=pltpu.CompilerParams(
            dimension_semantics=("parallel", "parallel"),
            vmem_limit_bytes=_VMEM_LIMIT),
    )(deconv, bias, xq)


# ----------------------------------------------------------------------------
# Full forward (training-mode semantics of ChannelDeconv.forward).
# ----------------------------------------------------------------------------
def channel_deconv_forward(x, block, eps=0.01, n_iter=5, sampling_stride=3):
    orig_ndim = x.ndim
    orig_dtype = x.dtype
    if orig_ndim == 2:
        N, C = x.shape
        H = W = 1
    else:
        N, C, H, W = x.shape
    B = block
    c = (C // B) * B
    assert c > 0, "block should be set smaller."
    K = c // B
    HW = H * W

    x_main = x if c == C else x[:, :c]   # TODO(synk): avoid slice copy via i/o aliasing
    if orig_ndim == 2:
        # HW == 1: re-frame as a single lane-dense (B, K*N) slab (q = k*N + n).
        xq = jnp.transpose(x_main).reshape(1, B, K * N)
        G, HWp = 1, N
    else:
        xq = x_main.reshape(N, B, K * HW)        # free re-view of NCHW
        G, HWp = N, HW
    Lq = K * HWp

    do_sample = (sampling_stride > 1 and H >= sampling_stride
                 and W >= sampling_stride)
    mod = sampling_stride ** 2 if do_sample else 1
    L = K * G * HWp
    ls = -(-L // mod)                            # number of sampled columns

    isz = np.dtype(x.dtype).itemsize
    t_stats = _lane_tile(Lq, B * (2 * isz + 16) + 8, _CAP_STATS)
    t_apply = _lane_tile(Lq, B * (4 * isz + 8), _CAP_APPLY)

    # Tiny (G, 1, Lq_pad) sample/bounds mask (also zero in the padded region so
    # partial last tiles never leak garbage into the accumulators).
    mask = _sampling_mask(G, HWp, Lq, t_stats, mod)

    # Fused stats + Newton-Schulz inverse sqrt.
    mean1, deconv = _stats_and_isqrt(xq, mask, ls, eps, n_iter, t_stats)
    bias = jnp.dot(deconv, mean1)                # deconv@(x-mean) = deconv@x - bias

    out_q = _apply_whitening(deconv, bias, xq, t_apply)

    if orig_ndim == 2:
        out_main = jnp.transpose(out_q.reshape(c, N))          # (N, c)
    else:
        out_main = out_q.reshape(N, c, H, W)

    if c != C:
        # Tail channels get plain standardization (tiny; JAX glue).
        x_tail = x[:, c:]
        x_tail_f = x_tail.astype(jnp.float32).reshape(N, -1)
        x_s = x_tail_f[:, ::sampling_stride ** 2] if do_sample else x_tail_f
        mean2 = jnp.mean(x_s)
        var = jnp.var(x_s, ddof=1)               # torch.var default: unbiased
        scale = lax.rsqrt(var + eps)
        tail = ((x_tail.astype(jnp.float32) - mean2) * scale).astype(orig_dtype)
        out = jnp.concatenate([out_main, tail], axis=1)
    else:
        out = out_main
    return out


# ----------------------------------------------------------------------------
# Pure-JAX reference (mirrors the PyTorch math, 4-D inputs) for sanity checks.
# ----------------------------------------------------------------------------
def _reference(x, block, eps=0.01, n_iter=5, sampling_stride=3):
    x = x.astype(jnp.float32)
    N, C, H, W = x.shape
    B = block
    c = (C // B) * B
    x1 = jnp.transpose(x[:, :c], (1, 0, 2, 3)).reshape(B, -1)
    if sampling_stride > 1 and H >= sampling_stride and W >= sampling_stride:
        x1_s = x1[:, ::sampling_stride ** 2]
    else:
        x1_s = x1
    mean1 = jnp.mean(x1_s, axis=-1, keepdims=True)
    cov = x1_s @ x1_s.T / x1_s.shape[1] + eps * jnp.eye(B, dtype=jnp.float32)
    norm_a = jnp.linalg.norm(cov)
    Y = cov / norm_a
    I = jnp.eye(B, dtype=jnp.float32)
    Z = I
    for _ in range(n_iter):
        T = 0.5 * (3.0 * I - Z @ Y)
        Y = Y @ T
        Z = T @ Z
    deconv = Z / jnp.sqrt(norm_a)
    x1c = deconv @ (x1 - mean1)
    out = jnp.transpose(x1c.reshape(c, N, H, W), (1, 0, 2, 3))
    if c != C:
        x_tail = x[:, c:]
        x_tmp = x_tail.reshape(N, -1)
        if sampling_stride > 1 and H >= sampling_stride and W >= sampling_stride:
            x_s = x_tmp[:, ::sampling_stride ** 2]
        else:
            x_s = x_tmp
        mean2 = jnp.mean(x_s)
        var = jnp.var(x_s, ddof=1)
        out = jnp.concatenate([out, (x_tail - mean2) / jnp.sqrt(var + eps)],
                              axis=1)
    return out


if __name__ == "__main__":
    key = jax.random.PRNGKey(0)
    k1, k2, k3 = jax.random.split(key, 3)
    block = 4  # ChannelDeconv(block=4), eps=0.01, n_iter=5, sampling_stride=3

    # Case 1: 4-D input, C divisible by block.
    x = jax.random.normal(k1, (2, 4, 16, 16), dtype=jnp.float32)
    fwd = jax.jit(functools.partial(channel_deconv_forward, block=block))
    out = jax.block_until_ready(fwd(x))
    ref = jax.block_until_ready(_reference(x, block))
    assert out.shape == x.shape and out.dtype == x.dtype
    np.testing.assert_allclose(np.asarray(out), np.asarray(ref),
                               rtol=2e-2, atol=2e-2)

    # Case 2: channel tail (C % block != 0) exercises the standardization path.
    x2 = jax.random.normal(k2, (2, 6, 16, 16), dtype=jnp.float32)
    out2 = jax.block_until_ready(
        jax.jit(functools.partial(channel_deconv_forward, block=block))(x2))
    ref2 = jax.block_until_ready(_reference(x2, block))
    np.testing.assert_allclose(np.asarray(out2), np.asarray(ref2),
                               rtol=2e-2, atol=2e-2)

    # Case 3: 2-D input path (viewed as (N, C, 1, 1); lane-dense re-framing).
    x3 = jax.random.normal(k3, (8, 8), dtype=jnp.float32)
    out3 = jax.block_until_ready(
        jax.jit(functools.partial(channel_deconv_forward, block=block))(x3))
    ref3 = jax.block_until_ready(
        _reference(x3.reshape(8, 8, 1, 1), block)).reshape(8, 8)
    np.testing.assert_allclose(np.asarray(out3), np.asarray(ref3),
                               rtol=2e-2, atol=2e-2)

    print("KERNEL_OK")
</pallas_src>

<mosaic_0001>
module attributes {stable_mosaic.version = 11 : i64} {
  func.func @_stats_isqrt_kernel(%arg0: i32, %arg1: i32, %arg2: memref<1x4x256xf32, #tpu.memory_space<vmem>>, %arg3: memref<1x1x256xbf16, #tpu.memory_space<vmem>>, %arg4: memref<4x1xf32, #tpu.memory_space<vmem>>, %arg5: memref<4x4xf32, #tpu.memory_space<vmem>>, %arg6: memref<4x1xf32, #tpu.memory_space<vmem>>, %arg7: memref<4x4xf32, #tpu.memory_space<vmem>>) attributes {dimension_semantics = [#tpu.dimension_semantics<arbitrary>, #tpu.dimension_semantics<arbitrary>], iteration_bounds = array<i64: 2, 1>, scalar_prefetch = 0 : i64, scratch_operands = 2 : i64, tpu.core_type = #tpu.core_type<tc>, window_params = [{transform_indices = @transform_0, window_bounds = array<i64: 1, 4, 256>}, {transform_indices = @transform_1, window_bounds = array<i64: 1, 1, 256>}, {pipeline_mode = #tpu.pipeline_mode<synchronous>, transform_indices = @transform_2, window_bounds = array<i64: 4, 1>}, {pipeline_mode = #tpu.pipeline_mode<synchronous>, transform_indices = @transform_3, window_bounds = array<i64: 4, 4>}]} {
    %c0_i32 = arith.constant 0 : i32
    %0 = arith.cmpi eq, %arg0, %c0_i32 : i32
    %c0_i32_0 = arith.constant 0 : i32
    %1 = arith.cmpi eq, %arg1, %c0_i32_0 : i32
    %2 = arith.andi %0, %1 : i1
    %3 = arith.extui %2 : i1 to i32
    %c0_i32_1 = arith.constant 0 : i32
    %4 = arith.cmpi ne, %3, %c0_i32_1 : i32
    scf.if %4 {
      %cst_20 = arith.constant 0.000000e+00 : f32
      %30 = vector.broadcast %cst_20 : f32 to vector<4x1xf32>
      %c0_21 = arith.constant 0 : index
      %c0_22 = arith.constant 0 : index
      %31 = vector.load %arg6[%c0_21, %c0_22] : memref<4x1xf32, #tpu.memory_space<vmem>>, vector<4x1xf32>
      tpu.vector_store %arg6[%c0_21, %c0_22], %30 {strides = array<i32>} : memref<4x1xf32, #tpu.memory_space<vmem>>, vector<4x1xf32>,
      %cst_23 = arith.constant 0.000000e+00 : f32
      %32 = vector.broadcast %cst_23 : f32 to vector<4x4xf32>
      %c0_24 = arith.constant 0 : index
      %c0_25 = arith.constant 0 : index
      %33 = vector.load %arg7[%c0_24, %c0_25] : memref<4x4xf32, #tpu.memory_space<vmem>>, vector<4x4xf32>
      tpu.vector_store %arg7[%c0_24, %c0_25], %32 {strides = array<i32>} : memref<4x4xf32, #tpu.memory_space<vmem>>, vector<4x4xf32>,
    } else {
    }
    %c0 = arith.constant 0 : index
    %c0_2 = arith.constant 0 : index
    %c0_3 = arith.constant 0 : index
    %5 = vector.load %arg2[%c0, %c0_2, %c0_3] : memref<1x4x256xf32, #tpu.memory_space<vmem>>, vector<1x4x256xf32>
    %6 = vector.shape_cast %5 : vector<1x4x256xf32> to vector<4x256xf32>
    %c0_4 = arith.constant 0 : index
    %c0_5 = arith.constant 0 : index
    %c0_6 = arith.constant 0 : index
    %7 = vector.load %arg3[%c0_4, %c0_5, %c0_6] : memref<1x1x256xbf16, #tpu.memory_space<vmem>>, vector<1x1x256xbf16>
    %8 = vector.shape_cast %7 : vector<1x1x256xbf16> to vector<1x256xbf16>
    %9 = arith.extf %8 : vector<1x256xbf16> to vector<1x256xf32>
    %cst = arith.constant 0.000000e+00 : f32
    %10 = vector.broadcast %cst : f32 to vector<1x256xf32>
    %11 = arith.cmpf ogt, %9, %10 : vector<1x256xf32>
    %cst_7 = arith.constant 0.000000e+00 : f32
    %12 = vector.shape_cast %11 : vector<1x256xi1> to vector<1x256xi1>
    %13 = vector.broadcast %12 : vector<1x256xi1> to vector<4x256xi1>
    %14 = vector.broadcast %cst_7 : f32 to vector<4x256xf32>
    %15 = arith.select %13, %6, %14 : vector<4x256xi1>, vector<4x256xf32>
    %c0_8 = arith.constant 0 : index
    %c0_9 = arith.constant 0 : index
    %16 = vector.load %arg6[%c0_8, %c0_9] : memref<4x1xf32, #tpu.memory_space<vmem>>, vector<4x1xf32>
    %cst_10 = arith.constant dense<0.000000e+00> : vector<4xf32>
    %17 = vector.multi_reduction <add>, %15, %cst_10 [1] : vector<4x256xf32> to vector<4xf32>
    %18 = vector.shape_cast %17 : vector<4xf32> to vector<4x1xf32>
    %19 = arith.addf %16, %18 : vector<4x1xf32>
    %c0_11 = arith.constant 0 : index
    %c0_12 = arith.constant 0 : index
    %20 = vector.load %arg6[%c0_11, %c0_12] : memref<4x1xf32, #tpu.memory_space<vmem>>, vector<4x1xf32>
    tpu.vector_store %arg6[%c0_11, %c0_12], %19 {strides = array<i32>} : memref<4x1xf32, #tpu.memory_space<vmem>>, vector<4x1xf32>,
    %c0_13 = arith.constant 0 : index
    %c0_14 = arith.constant 0 : index
    %21 = vector.load %arg7[%c0_13, %c0_14] : memref<4x4xf32, #tpu.memory_space<vmem>>, vector<4x4xf32>
    %cst_15 = arith.constant dense<0.000000e+00> : vector<4x4xf32>
    %22 = tpu.matmul %15, %15, %cst_15 {dimension_numbers = #tpu.dot_dimension_numbers<[1], [1], [0], [0], [0, 0, 1, 0], [], []>} : vector<4x256xf32>, vector<4x256xf32>, vector<4x4xf32> -> vector<4x4xf32>
    %23 = arith.addf %21, %22 : vector<4x4xf32>
    %c0_16 = arith.constant 0 : index
    %c0_17 = arith.constant 0 : index
    %24 = vector.load %arg7[%c0_16, %c0_17] : memref<4x4xf32, #tpu.memory_space<vmem>>, vector<4x4xf32>
    tpu.vector_store %arg7[%c0_16, %c0_17], %23 {strides = array<i32>} : memref<4x4xf32, #tpu.memory_space<vmem>>, vector<4x4xf32>,
    %c1_i32 = arith.constant 1 : i32
    %25 = arith.cmpi eq, %arg0, %c1_i32 : i32
    %c0_i32_18 = arith.constant 0 : i32
    %26 = arith.cmpi eq, %arg1, %c0_i32_18 : i32
    %27 = arith.andi %25, %26 : i1
    %28 = arith.extui %27 : i1 to i32
    %c0_i32_19 = arith.constant 0 : i32
    %29 = arith.cmpi ne, %28, %c0_i32_19 : i32
    scf.if %29 {
      %30 = tpu.iota {dimensions = array<i32: 0>} : vector<4x4xi32>
      %31 = tpu.iota {dimensions = array<i32: 1>} : vector<4x4xi32>
      %32 = arith.cmpi eq, %30, %31 : vector<4x4xi32>
      %33 = arith.extui %32 : vector<4x4xi1> to vector<4x4xi32>
      %34 = arith.sitofp %33 : vector<4x4xi32> to vector<4x4xf32>
      %c0_20 = arith.constant 0 : index
      %c0_21 = arith.constant 0 : index
      %35 = vector.load %arg7[%c0_20, %c0_21] : memref<4x4xf32, #tpu.memory_space<vmem>>, vector<4x4xf32>
      %cst_22 = arith.constant 0.0175438598 : f32
      %36 = vector.broadcast %cst_22 : f32 to vector<4x4xf32>
      %37 = arith.mulf %35, %36 : vector<4x4xf32>
      %cst_23 = arith.constant 0.00999999977 : f32
      %38 = vector.broadcast %cst_23 : f32 to vector<4x4xf32>
      %39 = arith.mulf %38, %34 : vector<4x4xf32>
      %40 = arith.addf %37, %39 : vector<4x4xf32>
      %41 = arith.mulf %40, %40 : vector<4x4xf32>
      %42 = vector.shape_cast %41 : vector<4x4xf32> to vector<1x4x4xf32>
      %cst_24 = arith.constant dense<0.000000e+00> : vector<1xf32>
      %43 = vector.multi_reduction <add>, %42, %cst_24 [1, 2] : vector<1x4x4xf32> to vector<1xf32>
      %44 = vector.shape_cast %43 : vector<1xf32> to vector<1x1x1xf32>
      %45 = vector.extract %44[0, 0, 0] : f32 from vector<1x1x1xf32>
      %46 = math.sqrt %45 : f32
      %47 = vector.broadcast %46 : f32 to vector<4x4xf32>
      %48 = arith.divf %40, %47 : vector<4x4xf32>
      %cst_25 = arith.constant 3.000000e+00 : f32
      %49 = vector.broadcast %cst_25 : f32 to vector<4x4xf32>
      %50 = arith.mulf %49, %34 : vector<4x4xf32>
      %cst_26 = arith.constant dense<0.000000e+00> : vector<4x4xf32>
      %51 = tpu.matmul %34, %48, %cst_26 {dimension_numbers = #tpu.dot_dimension_numbers<[1], [0], [0], [1], [0, 0, 1, 1], [], []>} : vector<4x4xf32>, vector<4x4xf32>, vector<4x4xf32> -> vector<4x4xf32>
      %52 = arith.subf %50, %51 : vector<4x4xf32>
      %cst_27 = arith.constant 5.000000e-01 : f32
      %53 = vector.broadcast %cst_27 : f32 to vector<4x4xf32>
      %54 = arith.mulf %53, %52 : vector<4x4xf32>
      %cst_28 = arith.constant dense<0.000000e+00> : vector<4x4xf32>
      %55 = tpu.matmul %48, %54, %cst_28 {dimension_numbers = #tpu.dot_dimension_numbers<[1], [0], [0], [1], [0, 0, 1, 1], [], []>} : vector<4x4xf32>, vector<4x4xf32>, vector<4x4xf32> -> vector<4x4xf32>
      %cst_29 = arith.constant dense<0.000000e+00> : vector<4x4xf32>
      %56 = tpu.matmul %54, %34, %cst_29 {dimension_numbers = #tpu.dot_dimension_numbers<[1], [0], [0], [1], [0, 0, 1, 1], [], []>} : vector<4x4xf32>, vector<4x4xf32>, vector<4x4xf32> -> vector<4x4xf32>
      %cst_30 = arith.constant 3.000000e+00 : f32
      %57 = vector.broadcast %cst_30 : f32 to vector<4x4xf32>
      %58 = arith.mulf %57, %34 : vector<4x4xf32>
      %cst_31 = arith.constant dense<0.000000e+00> : vector<4x4xf32>
      %59 = tpu.matmul %56, %55, %cst_31 {dimension_numbers = #tpu.dot_dimension_numbers<[1], [0], [0], [1], [0, 0, 1, 1], [], []>} : vector<4x4xf32>, vector<4x4xf32>, vector<4x4xf32> -> vector<4x4xf32>
      %60 = arith.subf %58, %59 : vector<4x4xf32>
      %cst_32 = arith.constant 5.000000e-01 : f32
      %61 = vector.broadcast %cst_32 : f32 to vector<4x4xf32>
      %62 = arith.mulf %61, %60 : vector<4x4xf32>
      %cst_33 = arith.constant dense<0.000000e+00> : vector<4x4xf32>
      %63 = tpu.matmul %55, %62, %cst_33 {dimension_numbers = #tpu.dot_dimension_numbers<[1], [0], [0], [1], [0, 0, 1, 1], [], []>} : vector<4x4xf32>, vector<4x4xf32>, vector<4x4xf32> -> vector<4x4xf32>
      %cst_34 = arith.constant dense<0.000000e+00> : vector<4x4xf32>
      %64 = tpu.matmul %62, %56, %cst_34 {dimension_numbers = #tpu.dot_dimension_numbers<[1], [0], [0], [1], [0, 0, 1, 1], [], []>} : vector<4x4xf32>, vector<4x4xf32>, vector<4x4xf32> -> vector<4x4xf32>
      %cst_35 = arith.constant 3.000000e+00 : f32
      %65 = vector.broadcast %cst_35 : f32 to vector<4x4xf32>
      %66 = arith.mulf %65, %34 : vector<4x4xf32>
      %cst_36 = arith.constant dense<0.000000e+00> : vector<4x4xf32>
      %67 = tpu.matmul %64, %63, %cst_36 {dimension_numbers = #tpu.dot_dimension_numbers<[1], [0], [0], [1], [0, 0, 1, 1], [], []>} : vector<4x4xf32>, vector<4x4xf32>, vector<4x4xf32> -> vector<4x4xf32>
      %68 = arith.subf %66, %67 : vector<4x4xf32>
      %cst_37 = arith.constant 5.000000e-01 : f32
      %69 = vector.broadcast %cst_37 : f32 to vector<4x4xf32>
      %70 = arith.mulf %69, %68 : vector<4x4xf32>
      %cst_38 = arith.constant dense<0.000000e+00> : vector<4x4xf32>
      %71 = tpu.matmul %63, %70, %cst_38 {dimension_numbers = #tpu.dot_dimension_numbers<[1], [0], [0], [1], [0, 0, 1, 1], [], []>} : vector<4x4xf32>, vector<4x4xf32>, vector<4x4xf32> -> vector<4x4xf32>
      %cst_39 = arith.constant dense<0.000000e+00> : vector<4x4xf32>
      %72 = tpu.matmul %70, %64, %cst_39 {dimension_numbers = #tpu.dot_dimension_numbers<[1], [0], [0], [1], [0, 0, 1, 1], [], []>} : vector<4x4xf32>, vector<4x4xf32>, vector<4x4xf32> -> vector<4x4xf32>
      %cst_40 = arith.constant 3.000000e+00 : f32
      %73 = vector.broadcast %cst_40 : f32 to vector<4x4xf32>
      %74 = arith.mulf %73, %34 : vector<4x4xf32>
      %cst_41 = arith.constant dense<0.000000e+00> : vector<4x4xf32>
      %75 = tpu.matmul %72, %71, %cst_41 {dimension_numbers = #tpu.dot_dimension_numbers<[1], [0], [0], [1], [0, 0, 1, 1], [], []>} : vector<4x4xf32>, vector<4x4xf32>, vector<4x4xf32> -> vector<4x4xf32>
      %76 = arith.subf %74, %75 : vector<4x4xf32>
      %cst_42 = arith.constant 5.000000e-01 : f32
      %77 = vector.broadcast %cst_42 : f32 to vector<4x4xf32>
      %78 = arith.mulf %77, %76 : vector<4x4xf32>
      %cst_43 = arith.constant dense<0.000000e+00> : vector<4x4xf32>
      %79 = tpu.matmul %71, %78, %cst_43 {dimension_numbers = #tpu.dot_dimension_numbers<[1], [0], [0], [1], [0, 0, 1, 1], [], []>} : vector<4x4xf32>, vector<4x4xf32>, vector<4x4xf32> -> vector<4x4xf32>
      %cst_44 = arith.constant dense<0.000000e+00> : vector<4x4xf32>
      %80 = tpu.matmul %78, %72, %cst_44 {dimension_numbers = #tpu.dot_dimension_numbers<[1], [0], [0], [1], [0, 0, 1, 1], [], []>} : vector<4x4xf32>, vector<4x4xf32>, vector<4x4xf32> -> vector<4x4xf32>
      %cst_45 = arith.constant 3.000000e+00 : f32
      %81 = vector.broadcast %cst_45 : f32 to vector<4x4xf32>
      %82 = arith.mulf %81, %34 : vector<4x4xf32>
      %cst_46 = arith.constant dense<0.000000e+00> : vector<4x4xf32>
      %83 = tpu.matmul %80, %79, %cst_46 {dimension_numbers = #tpu.dot_dimension_numbers<[1], [0], [0], [1], [0, 0, 1, 1], [], []>} : vector<4x4xf32>, vector<4x4xf32>, vector<4x4xf32> -> vector<4x4xf32>
      %84 = arith.subf %82, %83 : vector<4x4xf32>
      %cst_47 = arith.constant 5.000000e-01 : f32
      %85 = vector.broadcast %cst_47 : f32 to vector<4x4xf32>
      %86 = arith.mulf %85, %84 : vector<4x4xf32>
      %cst_48 = arith.constant dense<0.000000e+00> : vector<4x4xf32>
      %87 = tpu.matmul %86, %80, %cst_48 {dimension_numbers = #tpu.dot_dimension_numbers<[1], [0], [0], [1], [0, 0, 1, 1], [], []>} : vector<4x4xf32>, vector<4x4xf32>, vector<4x4xf32> -> vector<4x4xf32>
      %c0_49 = arith.constant 0 : index
      %c0_50 = arith.constant 0 : index
      %88 = vector.load %arg6[%c0_49, %c0_50] : memref<4x1xf32, #tpu.memory_space<vmem>>, vector<4x1xf32>
      %cst_51 = arith.constant 0.0175438598 : f32
      %89 = vector.broadcast %cst_51 : f32 to vector<4x1xf32>
      %90 = arith.mulf %88, %89 : vector<4x1xf32>
      %c0_52 = arith.constant 0 : index
      %c0_53 = arith.constant 0 : index
      %91 = vector.load %arg4[%c0_52, %c0_53] : memref<4x1xf32, #tpu.memory_space<vmem>>, vector<4x1xf32>
      tpu.vector_store %arg4[%c0_52, %c0_53], %90 {strides = array<i32>} : memref<4x1xf32, #tpu.memory_space<vmem>>, vector<4x1xf32>,
      %92 = math.rsqrt %46 : f32
      %93 = vector.broadcast %92 : f32 to vector<4x4xf32>
      %94 = arith.mulf %87, %93 : vector<4x4xf32>
      %c0_54 = arith.constant 0 : index
      %c0_55 = arith.constant 0 : index
      %95 = vector.load %arg5[%c0_54, %c0_55] : memref<4x4xf32, #tpu.memory_space<vmem>>, vector<4x4xf32>
      tpu.vector_store %arg5[%c0_54, %c0_55], %94 {strides = array<i32>} : memref<4x4xf32, #tpu.memory_space<vmem>>, vector<4x4xf32>,
    } else {
    }
    return
  }
  func.func @transform_0(%arg0: i32, %arg1: i32) -> (i32, i32, i32) {
    %c0_i32 = arith.constant 0 : i32
    %c0_i32_0 = arith.constant 0 : i32
    return %arg0, %c0_i32, %arg1 : i32, i32, i32
  }
  func.func @transform_1(%arg0: i32, %arg1: i32) -> (i32, i32, i32) {
    %c0_i32 = arith.constant 0 : i32
    %c0_i32_0 = arith.constant 0 : i32
    return %arg0, %c0_i32, %arg1 : i32, i32, i32
  }
  func.func @transform_2(%arg0: i32, %arg1: i32) -> (i32, i32) {
    %c0_i32 = arith.constant 0 : i32
    %c0_i32_0 = arith.constant 0 : i32
    %c0_i32_1 = arith.constant 0 : i32
    return %c0_i32, %c0_i32_0 : i32, i32
  }
  func.func @transform_3(%arg0: i32, %arg1: i32) -> (i32, i32) {
    %c0_i32 = arith.constant 0 : i32
    %c0_i32_0 = arith.constant 0 : i32
    %c0_i32_1 = arith.constant 0 : i32
    return %c0_i32, %c0_i32_0 : i32, i32
  }
}

module attributes {stable_mosaic.version = 11 : i64} {
  func.func @_apply_kernel(%arg0: i32, %arg1: i32, %arg2: memref<4x4xf32, #tpu.memory_space<vmem>>, %arg3: memref<4x1xf32, #tpu.memory_space<vmem>>, %arg4: memref<1x4x256xf32, #tpu.memory_space<vmem>>, %arg5: memref<1x4x256xf32, #tpu.memory_space<vmem>>) attributes {dimension_semantics = [#tpu.dimension_semantics<parallel>, #tpu.dimension_semantics<parallel>], iteration_bounds = array<i64: 2, 1>, scalar_prefetch = 0 : i64, scratch_operands = 0 : i64, tpu.core_type = #tpu.core_type<tc>, window_params = [{pipeline_mode = #tpu.pipeline_mode<synchronous>, transform_indices = @transform_0, window_bounds = array<i64: 4, 4>}, {pipeline_mode = #tpu.pipeline_mode<synchronous>, transform_indices = @transform_1, window_bounds = array<i64: 4, 1>}, {transform_indices = @transform_2, window_bounds = array<i64: 1, 4, 256>}, {transform_indices = @transform_3, window_bounds = array<i64: 1, 4, 256>}]} {
    %c0 = arith.constant 0 : index
    %c0_0 = arith.constant 0 : index
    %c0_1 = arith.constant 0 : index
    %0 = vector.load %arg4[%c0, %c0_0, %c0_1] : memref<1x4x256xf32, #tpu.memory_space<vmem>>, vector<1x4x256xf32>
    %1 = vector.shape_cast %0 : vector<1x4x256xf32> to vector<4x256xf32>
    %c0_2 = arith.constant 0 : index
    %c0_3 = arith.constant 0 : index
    %2 = vector.load %arg2[%c0_2, %c0_3] : memref<4x4xf32, #tpu.memory_space<vmem>>, vector<4x4xf32>
    %cst = arith.constant dense<0.000000e+00> : vector<4x256xf32>
    %3 = tpu.matmul %2, %1, %cst {dimension_numbers = #tpu.dot_dimension_numbers<[1], [0], [0], [1], [0, 0, 1, 1], [], []>} : vector<4x4xf32>, vector<4x256xf32>, vector<4x256xf32> -> vector<4x256xf32>
    %c0_4 = arith.constant 0 : index
    %c0_5 = arith.constant 0 : index
    %4 = vector.load %arg3[%c0_4, %c0_5] : memref<4x1xf32, #tpu.memory_space<vmem>>, vector<4x1xf32>
    %5 = vector.broadcast %4 : vector<4x1xf32> to vector<4x256xf32>
    %6 = arith.subf %3, %5 : vector<4x256xf32>
    %c0_6 = arith.constant 0 : index
    %c0_7 = arith.constant 0 : index
    %c0_8 = arith.constant 0 : index
    %7 = vector.load %arg5[%c0_6, %c0_7, %c0_8] : memref<1x4x256xf32, #tpu.memory_space<vmem>>, vector<1x4x256xf32>
    %8 = vector.shape_cast %7 : vector<1x4x256xf32> to vector<4x256xf32>
    %9 = vector.shape_cast %6 : vector<4x256xf32> to vector<1x4x256xf32>
    tpu.vector_store %arg5[%c0_6, %c0_7, %c0_8], %9 {strides = array<i32>} : memref<1x4x256xf32, #tpu.memory_space<vmem>>, vector<1x4x256xf32>,
    return
  }
  func.func @transform_0(%arg0: i32, %arg1: i32) -> (i32, i32) {
    %c0_i32 = arith.constant 0 : i32
    %c0_i32_0 = arith.constant 0 : i32
    %c0_i32_1 = arith.constant 0 : i32
    return %c0_i32, %c0_i32_0 : i32, i32
  }
  func.func @transform_1(%arg0: i32, %arg1: i32) -> (i32, i32) {
    %c0_i32 = arith.constant 0 : i32
    %c0_i32_0 = arith.constant 0 : i32
    %c0_i32_1 = arith.constant 0 : i32
    return %c0_i32, %c0_i32_0 : i32, i32
  }
  func.func @transform_2(%arg0: i32, %arg1: i32) -> (i32, i32, i32) {
    %c0_i32 = arith.constant 0 : i32
    %c0_i32_0 = arith.constant 0 : i32
    return %arg0, %c0_i32, %arg1 : i32, i32, i32
  }
  func.func @transform_3(%arg0: i32, %arg1: i32) -> (i32, i32, i32) {
    %c0_i32 = arith.constant 0 : i32
    %c0_i32_0 = arith.constant 0 : i32
    return %arg0, %c0_i32, %arg1 : i32, i32, i32
  }
}

</mosaic_0001>

<llo_original>
// kernel: channel_deconv_forward.3
$region0: #{channel_deconv_forward.3}
  #allocation0 [shape = 'u32[]', space=smem, size = 0x4, offset = 0x4, fixed_abs, tag = 'smem constant byte address 0x4 - core index']
  #allocation1 [shape = 'u32[144,128]{1,0:T(1,128)}', space=vmem, size = 0x12000, scoped, tag = 'internal scratch']
  %s0 = inlined_call_operand.vmem [shape: f32[4,4], index: 0, kind: input, shape index: {}]
  %s1 = inlined_call_operand.vmem [shape: f32[4,1], index: 1, kind: input, shape index: {}]
  %s2 = inlined_call_operand.vmem [shape: f32[2,4,256], index: 2, kind: input, shape index: {}]
  %s3 = inlined_call_operand.vmem [shape: f32[2,4,256], index: 3, kind: output, shape index: {}]
  %s4 = sld [smem:[#allocation0]]
  $region45: #{channel_deconv_forward.3} parent=0
    _
  %s6 = ssub.s32 1, %s4
  %s7 = scalar_select 0, %s6, %s4
  loop: start=0, step=1, limit=4
  $region2: #{channel_deconv_forward.3} parent=0 // loop_pre_header
    _
  $region3: #{channel_deconv_forward.3} parent=0 // loop_header
    %s9 = sphi 0, %s13
    %p10 = scmp.ge.s32.totalorder %s9, 4
    %s16 = sphi 0, %s28
    %s17 = sphi 0, %s24
    %s18 = sphi 0, %s16
    %s19 = sphi 0, %s17
    %s20 = sphi 0, %s18
    %s21 = sphi 0, %s19
    %s29 = sphi 0, %s29
    %s31 = sphi 0, %s29
    %s32 = sphi 0, %s31
    %s46 = sphi 0, %s32
    %s50 = sphi 0, %s50
    %s52 = sphi 0, %s50
    %s53 = sphi 0, %s52
    %s67 = sphi 0, %s53
    %s75 = sphi 0, %s77
    %s78 = sphi 0, %s75
    %s79 = sphi 0, %s78
    %s95 = sphi 0, %s79
    %s103 = sphi 0, %s105
    %s106 = sphi 0, %s103
    %s107 = sphi 0, %s106
    %s123 = sphi 0, %s107
  $region4: #{channel_deconv_forward.3} parent=0 // loop_header_branch
    %12 = sbr.rel (%p10) target = $region8
  $region5: #{channel_deconv_forward.3} parent=0 // loop_body
    %s14 = ssub.s32 %s9, 1
    %s15 = ssub.s32 %s9, 2
    %s22 = sadd.s32 1, %s17
    %p23 = scmp.ge.s32.totalorder %s22, 1
    %s24 = scalar_select %p23, 0, %s22
    %s25 = sadd.s32 1, %s16
    %s26 = scalar_select %p23, %s25, %s16
    %p27 = scmp.ge.s32.totalorder %s26, 2
    %s28 = scalar_select %p27, 0, %s26
    %s30 = sadd.s32 %s29, 1
    %p33 = scmp.eq.s32.totalorder %s9, 1
    %p34 = scmp.ne.s32.totalorder %s29, %s31
    %p35 = scmp.eq.s32.totalorder %s9, 0
    %p36 = por %p34, %p35
    %p37 = scmp.ne.s32.totalorder %s29, %s31
    %p38 = scmp.eq.s32.totalorder %s14, 1
    %p39 = por %p37, %p38
    %p40 = scmp.ne.s32.totalorder %s31, %s32
    %p41 = scmp.eq.s32.totalorder %s14, 0
    %p42 = por %p40, %p41
    %p43 = scmp.ne.s32.totalorder %s31, %s32
    %p44 = scmp.eq.s32.totalorder %s15, 1
    %p45 = por %p43, %p44
    %p47 = scmp.ne.s32.totalorder %s32, %s46
    %p48 = scmp.eq.s32.totalorder %s15, 0
    %p49 = por %p47, %p48
    %s51 = sadd.s32 %s50, 1
    %p54 = scmp.eq.s32.totalorder %s9, 1
    %p55 = scmp.ne.s32.totalorder %s50, %s52
    %p56 = scmp.eq.s32.totalorder %s9, 0
    %p57 = por %p55, %p56
    %p58 = scmp.ne.s32.totalorder %s50, %s52
    %p59 = scmp.eq.s32.totalorder %s14, 1
    %p60 = por %p58, %p59
    %p61 = scmp.ne.s32.totalorder %s52, %s53
    %p62 = scmp.eq.s32.totalorder %s14, 0
    %p63 = por %p61, %p62
    %p64 = scmp.ne.s32.totalorder %s52, %s53
    %p65 = scmp.eq.s32.totalorder %s15, 1
    %p66 = por %p64, %p65
    %p68 = scmp.ne.s32.totalorder %s53, %s67
    %p69 = scmp.eq.s32.totalorder %s15, 0
    %p70 = por %p68, %p69
    %s71 = ssub.s32 %s16, %s28
    %s72 = ssub.s32 %s17, %s24
    %s73 = sor.u32 %s71, %s72
    %p74 = scmp.eq.s32.totalorder %s73, 0
    %s76 = sadd.s32 %s75, 1
    %s77 = scalar_select %p74, %s75, %s76
    %p80 = pneg %p74
    %p81 = scmp.eq.s32.totalorder %s9, 1
    %p82 = por %p80, %p81
    %p83 = scmp.ne.s32.totalorder %s75, %s78
    %p84 = scmp.eq.s32.totalorder %s9, 0
    %p85 = por %p83, %p84
    %p86 = scmp.ne.s32.totalorder %s75, %s78
    %p87 = scmp.eq.s32.totalorder %s14, 1
    %p88 = por %p86, %p87
    %p89 = scmp.ne.s32.totalorder %s78, %s79
    %p90 = scmp.eq.s32.totalorder %s14, 0
    %p91 = por %p89, %p90
    %p92 = scmp.ne.s32.totalorder %s78, %s79
    %p93 = scmp.eq.s32.totalorder %s15, 1
    %p94 = por %p92, %p93
    %p96 = scmp.ne.s32.totalorder %s79, %s95
    %p97 = scmp.eq.s32.totalorder %s15, 0
    %p98 = por %p96, %p97
    %s99 = ssub.s32 %s16, %s28
    %s100 = ssub.s32 %s17, %s24
    %s101 = sor.u32 %s99, %s100
    %p102 = scmp.eq.s32.totalorder %s101, 0
    %s104 = sadd.s32 %s103, 1
    %s105 = scalar_select %p102, %s103, %s104
    %p108 = pneg %p102
    %p109 = scmp.eq.s32.totalorder %s9, 1
    %p110 = por %p108, %p109
    %p111 = scmp.ne.s32.totalorder %s103, %s106
    %p112 = scmp.eq.s32.totalorder %s9, 0
    %p113 = por %p111, %p112
    %p114 = scmp.ne.s32.totalorder %s103, %s106
    %p115 = scmp.eq.s32.totalorder %s14, 1
    %p116 = por %p114, %p115
    %p117 = scmp.ne.s32.totalorder %s106, %s107
    %p118 = scmp.eq.s32.totalorder %s14, 0
    %p119 = por %p117, %p118
    %p120 = scmp.ne.s32.totalorder %s106, %s107
    %p121 = scmp.eq.s32.totalorder %s15, 1
    %p122 = por %p120, %p121
    %p124 = scmp.ne.s32.totalorder %s107, %s123
    %p125 = scmp.eq.s32.totalorder %s15, 0
    %p126 = por %p124, %p125
    %p127 = scmp.le.s32.totalorder 1, %s9
    %p128 = scmp.lt.s32.totalorder %s9, 3
    %p129 = pnand %p127, %p128
    %p130 = pneg %p129
    // Predicated region
    $region9: #{channel_deconv_forward.3} parent=5 // pred_check
      _
    $region10: #{channel_deconv_forward.3} parent=5 // pred_check_branch
      %132 = sbr.rel (%p129) target = $region12
    $region11: #{channel_deconv_forward.3} parent=5 // pred_region
      %s133 = ssub.s32 %s9, 1
      // Predicated region
      $region13: #{channel_deconv_forward.3} parent=11 // pred_check
        %p134 = pneg %p42
      $region14: #{channel_deconv_forward.3} parent=11 // pred_check_branch
        %136 = sbr.rel (%p134) target = $region16
      $region15: #{channel_deconv_forward.3} parent=11 // pred_region
        _
      $region16: #{channel_deconv_forward.3} parent=11 // pred_fallthru
        _
      // Predicated region
      $region17: #{channel_deconv_forward.3} parent=11 // pred_check
        %p137 = pneg %p63
      $region18: #{channel_deconv_forward.3} parent=11 // pred_check_branch
        %139 = sbr.rel (%p137) target = $region20
      $region19: #{channel_deconv_forward.3} parent=11 // pred_region
        _
      $region20: #{channel_deconv_forward.3} parent=11 // pred_fallthru
        _
    $region12: #{channel_deconv_forward.3} parent=5 // pred_fallthru
      _
    %p140 = scmp.lt.s32.totalorder %s9, 2
    // Predicated region
    $region21: #{channel_deconv_forward.3} parent=5 // pred_check
      %p141 = pneg %p140
    $region22: #{channel_deconv_forward.3} parent=5 // pred_check_branch
      %143 = sbr.rel (%p141) target = $region24
    $region23: #{channel_deconv_forward.3} parent=5 // pred_region
      // Predicated region
      $region25: #{channel_deconv_forward.3} parent=23 // pred_check
        %p144 = pneg %p85
      $region26: #{channel_deconv_forward.3} parent=23 // pred_check_branch
        %146 = sbr.rel (%p144) target = $region28
      $region27: #{channel_deconv_forward.3} parent=23 // pred_region
        %s147 = smul.u32 2, %s17
        %p148 = scmp.lt.s32.totalorder %s16, 1
        %s149 = scalar_select %p148, %s16, 1
        %p150 = scmp.lt.s32.totalorder %s147, 1
        %s151 = scalar_select %p150, %s147, 1
        %s152 = smul.addr %s149, 2
        %s153 = sadd.s32 %s151, %s152
        %s154 = smul.addr %s153, 4
        %s155 = scalar_lea.vmem %s2, %s154
        %s156 = smul.u32 2, %s17
      $region28: #{channel_deconv_forward.3} parent=23 // pred_fallthru
        _
    $region24: #{channel_deconv_forward.3} parent=5 // pred_fallthru
      _
    %p157 = scmp.le.s32.totalorder 1, %s9
    %p158 = scmp.lt.s32.totalorder %s9, 3
    %p159 = pnand %p157, %p158
    %p160 = pneg %p159
    // Predicated region
    $region29: #{channel_deconv_forward.3} parent=5 // pred_check
      _
    $region30: #{channel_deconv_forward.3} parent=5 // pred_check_branch
      %162 = sbr.rel (%p159) target = $region32
    $region31: #{channel_deconv_forward.3} parent=5 // pred_region
      %s163 = ssub.s32 %s9, 1
      %p164 = pneg %p42
      %p165 = pneg %p39
      %p166 = pneg %p63
      %p167 = pneg %p60
      %s168 = smul.u32 2, %s19
      %p169 = scmp.lt.s32.totalorder %s18, 1
      %s170 = scalar_select %p169, %s18, 1
      %p171 = scmp.lt.s32.totalorder %s168, 1
      %s172 = scalar_select %p171, %s168, 1
      %s173 = smul.addr %s170, 2
      %s174 = sadd.s32 %s172, %s173
      %s175 = smul.addr %s174, 4
      %s176 = scalar_lea.vmem %s2, %s175
      %p177 = pneg %p91
      %p178 = pneg %p88
      %p179 = pneg %p119
      %p180 = pneg %p116
      %s181 = smul.u32 2, %s19
      %p182 = scmp.lt.s32.totalorder %s18, 1
      %s183 = scalar_select %p182, %s18, 1
      %p184 = scmp.lt.s32.totalorder %s181, 1
      %s185 = scalar_select %p184, %s181, 1
      %s186 = smul.addr %s183, 2
      %s187 = sadd.s32 %s185, %s186
      %s188 = smul.addr %s187, 4
      %s189 = scalar_lea.vmem %s3, %s188
      %s190 = smul.u32 2, %s19
      %p191 = scmp.lt.s32.totalorder %s18, 1
      %s192 = scalar_select %p191, %s18, 1
      %p193 = scmp.lt.s32.totalorder %s190, 1
      %s194 = scalar_select %p193, %s190, 1
      %s195 = smul.addr %s192, 2
      %s196 = sadd.s32 %s194, %s195
      %s197 = smul.addr %s196, 4
      %s198 = scalar_lea.vmem %s2, %s197
      %s199 = smul.u32 2, %s19
      %s200 = smul.u32 2, %s19
      %p201 = scmp.lt.s32.totalorder %s18, 1
      %s202 = scalar_select %p201, %s18, 1
      %p203 = scmp.lt.s32.totalorder %s200, 1
      %s204 = scalar_select %p203, %s200, 1
      %s205 = smul.addr %s202, 2
      %s206 = sadd.s32 %s204, %s205
      %s207 = smul.addr %s206, 4
      %s208 = scalar_lea.vmem %s3, %s207
      %s209 = smul.u32 2, %s19
      %v210 = vld [vmem:[%s198] sm:$0xff]
      %v211 = vld [vmem:[%s0] sm:$0xf]
      %v213 = vcombine.high %v210, %v210
      %vm214 = vcmask 31744
      %v216 = vsel %vm214, %v211, 0
      %vm218 = vcmask 1043456
      %v219 = vsel %vm218, %v210, 0
      %v221 = vsel %vm218, %v213, 0
      %223 = vmatprep.subr.mxu0 %v221
      %224 = vmatpush1.msra.mxu0 %v219
      %225 = vmatprep.subr.mxu0 0.0
      %226 = vmatpush1.msra.mxu0 0.0
      %227 = vmatprep.subr.mxu0 0.0
      %228 = vmatpush1.msra.mxu0 0.0
      %229 = vmatprep.subr.mxu0 0.0
      %230 = vmatpush1.msra.mxu0 0.0
      %231 = vmatprep.subr.mxu0 0.0
      %232 = vmatpush1.msra.mxu0 0.0
      %233 = vmatprep.subr.mxu0 0.0
      %234 = vmatpush1.msra.mxu0 0.0
      %235 = vmatprep.subr.mxu0 0.0
      %236 = vmatpush1.msra.mxu0 0.0
      %237 = vmatprep.subr.mxu0 0.0
      %238 = vmatpush1.msra.mxu0 0.0
      %239 = vmatprep.subr.mxu0 0.0
      %240 = vmatpush1.msra.mxu0 0.0
      %241 = vmatprep.subr.mxu0 0.0
      %242 = vmatpush1.msra.mxu0 0.0
      %243 = vmatprep.subr.mxu0 0.0
      %244 = vmatpush1.msra.mxu0 0.0
      %245 = vmatprep.subr.mxu0 0.0
      %246 = vmatpush1.msra.mxu0 0.0
      %247 = vmatprep.subr.mxu0 0.0
      %248 = vmatpush1.msra.mxu0 0.0
      %249 = vmatprep.subr.mxu0 0.0
      %250 = vmatpush1.msra.mxu0 0.0
      %251 = vmatprep.subr.mxu0 0.0
      %252 = vmatpush1.msra.mxu0 0.0
      %253 = vmatprep.subr.mxu0 0.0
      %254 = vmatpush1.msra.mxu0 0.0
      %255 = vmatprep.subr.mxu0 0.0
      %256 = vmatpush1.msra.mxu0 0.0
      %257 = vmatprep.subr.mxu0 0.0
      %258 = vmatpush1.msra.mxu0 0.0
      %259 = vmatprep.subr.mxu0 0.0
      %260 = vmatpush1.msra.mxu0 0.0
      %261 = vmatprep.subr.mxu0 0.0
      %262 = vmatpush1.msra.mxu0 0.0
      %263 = vmatprep.subr.mxu0 0.0
      %264 = vmatpush1.msra.mxu0 0.0
      %265 = vmatprep.subr.mxu0 0.0
      %266 = vmatpush1.msra.mxu0 0.0
      %267 = vmatprep.subr.mxu0 0.0
      %268 = vmatpush1.msra.mxu0 0.0
      %269 = vmatprep.subr.mxu0 0.0
      %270 = vmatpush1.msra.mxu0 0.0
      %271 = vmatprep.subr.mxu0 0.0
      %272 = vmatpush1.msra.mxu0 0.0
      %273 = vmatprep.subr.mxu0 0.0
      %274 = vmatpush1.msra.mxu0 0.0
      %275 = vmatprep.subr.mxu0 0.0
      %276 = vmatpush1.msra.mxu0 0.0
      %277 = vmatprep.subr.mxu0 0.0
      %278 = vmatpush1.msra.mxu0 0.0
      %279 = vmatprep.subr.mxu0 0.0
      %280 = vmatpush1.msra.mxu0 0.0
      %281 = vmatprep.subr.mxu0 0.0
      %282 = vmatpush1.msra.mxu0 0.0
      %283 = vmatprep.subr.mxu0 0.0
      %284 = vmatpush1.msra.mxu0 0.0
      %285 = vmatprep.subr.mxu0 0.0
      %286 = vmatpush1.msra.mxu0 0.0
      %287 = vmatprep.mubr.f32.mxu0 0.0
      %288 = vmatmul.mubr.f32.gmra.mrb[0].mxu0 %v216
      %v289 = vpop.f32.mrb[0].mxu0
      %v290 = vadd.f32 0.0, %v289
      %v291 = vpop.f32.mrb[0].mxu0
      %v292 = vadd.f32 0.0, %v291
      %293 = vdwg.mxu0
      %v294 = vld [vmem:[%s1] sm:$0xf]
      %296 = vset.pattern.permute.xlu0 0
      %297 = vperm.xlu0 %296, %v294
      %v298 = vpop.permute.xlu0 %297
      %v300 = vsub.f32 %v290, %v298
      %v301 = vsub.f32 %v292, %v298
      %v304 = vcombine.low %v300, %v301
      %306 = vst [vmem:[%s208] sm:$0xff] %v304
      %s307 = smul.u32 2, %s19
      %p308 = scmp.lt.s32.totalorder %s18, 1
      %s309 = scalar_select %p308, %s18, 1
      %p310 = scmp.lt.s32.totalorder %s307, 1
      %s311 = scalar_select %p310, %s307, 1
      %s312 = smul.addr %s309, 2
      %s313 = sadd.s32 %s311, %s312
      %s314 = smul.addr %s313, 4
      %s315 = scalar_lea.vmem %s3, %s314
      // Predicated region
      $region33: #{channel_deconv_forward.3} parent=31 // pred_check
        %p316 = pneg %p116
      $region34: #{channel_deconv_forward.3} parent=31 // pred_check_branch
        %318 = sbr.rel (%p316) target = $region36
      $region35: #{channel_deconv_forward.3} parent=31 // pred_region
        %s319 = smul.u32 2, %s19
      $region36: #{channel_deconv_forward.3} parent=31 // pred_fallthru
        _
    $region32: #{channel_deconv_forward.3} parent=5 // pred_fallthru
      _
    %p320 = scmp.le.s32.totalorder 2, %s9
    // Predicated region
    $region37: #{channel_deconv_forward.3} parent=5 // pred_check
      %p321 = pneg %p320
    $region38: #{channel_deconv_forward.3} parent=5 // pred_check_branch
      %323 = sbr.rel (%p321) target = $region40
    $region39: #{channel_deconv_forward.3} parent=5 // pred_region
      %s324 = ssub.s32 %s9, 2
      // Predicated region
      $region41: #{channel_deconv_forward.3} parent=39 // pred_check
        %p325 = pneg %p122
      $region42: #{channel_deconv_forward.3} parent=39 // pred_check_branch
        %327 = sbr.rel (%p325) target = $region44
      $region43: #{channel_deconv_forward.3} parent=39 // pred_region
        %s328 = smul.u32 2, %s21
        %p329 = scmp.lt.s32.totalorder %s20, 1
        %s330 = scalar_select %p329, %s20, 1
        %p331 = scmp.lt.s32.totalorder %s328, 1
        %s332 = scalar_select %p331, %s328, 1
        %s333 = smul.addr %s330, 2
        %s334 = sadd.s32 %s332, %s333
        %s335 = smul.addr %s334, 4
        %s336 = scalar_lea.vmem %s3, %s335
      $region44: #{channel_deconv_forward.3} parent=39 // pred_fallthru
        _
    $region40: #{channel_deconv_forward.3} parent=5 // pred_fallthru
      _
  $region6: #{channel_deconv_forward.3} parent=0 // loop_footer
    %s13 = sadd.s32 1, %s9
  $region7: #{channel_deconv_forward.3} parent=0 // loop_footer_branch
    %8 = sbr.rel target = $region3
  $region8: #{channel_deconv_forward.3} parent=0 // loop_exit
    _

// kernel: channel_deconv_forward.2
$region0: #{channel_deconv_forward.2}
  #allocation0 [shape = 'u32[]', space=smem, size = 0x4, offset = 0x4, fixed_abs, tag = 'smem constant byte address 0x4 - core index']
  #allocation1 [shape = 'u32[144,128]{1,0:T(1,128)}', space=vmem, size = 0x12000, scoped, tag = 'internal scratch']
  #allocation2 [shape = 'f32[4,1]{1,0:T(4,128)}', space=vmem, size = 0x800, scoped, tag = 'scratch operand']
  #allocation3 [shape = 'f32[4,4]{1,0:T(4,128)}', space=vmem, size = 0x800, scoped, tag = 'scratch operand']
  %s0 = inlined_call_operand.vmem [shape: f32[2,4,256], index: 0, kind: input, shape index: {}]
  %s1 = inlined_call_operand.vmem [shape: bf16[2,1,256], index: 1, kind: input, shape index: {}]
  %s2 = inlined_call_operand.vmem [shape: f32[4,1], index: 2, kind: output, shape index: {0}]
  %s3 = inlined_call_operand.vmem [shape: f32[4,4], index: 3, kind: output, shape index: {1}]
  %4 = xla_tuple %s2, %s3
  %s5 = sld [smem:[#allocation0]]
  $region57: #{channel_deconv_forward.2} parent=0
    _
  %s7 = ssub.s32 1, %s5
  %s8 = scalar_select 0, %s7, %s5
  loop: start=0, step=1, limit=4
  $region2: #{channel_deconv_forward.2} parent=0 // loop_pre_header
    _
  $region3: #{channel_deconv_forward.2} parent=0 // loop_header
    %s10 = sphi 0, %s14
    %p11 = scmp.ge.s32.totalorder %s10, 4
    %s17 = sphi 0, %s29
    %s18 = sphi 0, %s25
    %s19 = sphi 0, %s17
    %s20 = sphi 0, %s18
    %s21 = sphi 0, %s19
    %s22 = sphi 0, %s20
    %s34 = sphi 0, %s36
    %s37 = sphi 0, %s34
    %s38 = sphi 0, %s37
    %s54 = sphi 0, %s38
    %s62 = sphi 0, %s64
    %s65 = sphi 0, %s62
    %s66 = sphi 0, %s65
    %s82 = sphi 0, %s66
    %s86 = sphi 0, %s86
    %s88 = sphi 0, %s86
    %s89 = sphi 0, %s88
    %s103 = sphi 0, %s89
    %s107 = sphi 0, %s107
    %s109 = sphi 0, %s107
    %s110 = sphi 0, %s109
    %s124 = sphi 0, %s110
  $region4: #{channel_deconv_forward.2} parent=0 // loop_header_branch
    %13 = sbr.rel (%p11) target = $region8
  $region5: #{channel_deconv_forward.2} parent=0 // loop_body
    %s15 = ssub.s32 %s10, 1
    %s16 = ssub.s32 %s10, 2
    %s23 = sadd.s32 1, %s18
    %p24 = scmp.ge.s32.totalorder %s23, 1
    %s25 = scalar_select %p24, 0, %s23
    %s26 = sadd.s32 1, %s17
    %s27 = scalar_select %p24, %s26, %s17
    %p28 = scmp.ge.s32.totalorder %s27, 2
    %s29 = scalar_select %p28, 0, %s27
    %s30 = ssub.s32 %s17, %s29
    %s31 = ssub.s32 %s18, %s25
    %s32 = sor.u32 %s30, %s31
    %p33 = scmp.eq.s32.totalorder %s32, 0
    %s35 = sadd.s32 %s34, 1
    %s36 = scalar_select %p33, %s34, %s35
    %p39 = pneg %p33
    %p40 = scmp.eq.s32.totalorder %s10, 1
    %p41 = por %p39, %p40
    %p42 = scmp.ne.s32.totalorder %s34, %s37
    %p43 = scmp.eq.s32.totalorder %s10, 0
    %p44 = por %p42, %p43
    %p45 = scmp.ne.s32.totalorder %s34, %s37
    %p46 = scmp.eq.s32.totalorder %s15, 1
    %p47 = por %p45, %p46
    %p48 = scmp.ne.s32.totalorder %s37, %s38
    %p49 = scmp.eq.s32.totalorder %s15, 0
    %p50 = por %p48, %p49
    %p51 = scmp.ne.s32.totalorder %s37, %s38
    %p52 = scmp.eq.s32.totalorder %s16, 1
    %p53 = por %p51, %p52
    %p55 = scmp.ne.s32.totalorder %s38, %s54
    %p56 = scmp.eq.s32.totalorder %s16, 0
    %p57 = por %p55, %p56
    %s58 = ssub.s32 %s17, %s29
    %s59 = ssub.s32 %s18, %s25
    %s60 = sor.u32 %s58, %s59
    %p61 = scmp.eq.s32.totalorder %s60, 0
    %s63 = sadd.s32 %s62, 1
    %s64 = scalar_select %p61, %s62, %s63
    %p67 = pneg %p61
    %p68 = scmp.eq.s32.totalorder %s10, 1
    %p69 = por %p67, %p68
    %p70 = scmp.ne.s32.totalorder %s62, %s65
    %p71 = scmp.eq.s32.totalorder %s10, 0
    %p72 = por %p70, %p71
    %p73 = scmp.ne.s32.totalorder %s62, %s65
    %p74 = scmp.eq.s32.totalorder %s15, 1
    %p75 = por %p73, %p74
    %p76 = scmp.ne.s32.totalorder %s65, %s66
    %p77 = scmp.eq.s32.totalorder %s15, 0
    %p78 = por %p76, %p77
    %p79 = scmp.ne.s32.totalorder %s65, %s66
    %p80 = scmp.eq.s32.totalorder %s16, 1
    %p81 = por %p79, %p80
    %p83 = scmp.ne.s32.totalorder %s66, %s82
    %p84 = scmp.eq.s32.totalorder %s16, 0
    %p85 = por %p83, %p84
    %s87 = sadd.s32 %s86, 1
    %p90 = scmp.eq.s32.totalorder %s10, 1
    %p91 = scmp.ne.s32.totalorder %s86, %s88
    %p92 = scmp.eq.s32.totalorder %s10, 0
    %p93 = por %p91, %p92
    %p94 = scmp.ne.s32.totalorder %s86, %s88
    %p95 = scmp.eq.s32.totalorder %s15, 1
    %p96 = por %p94, %p95
    %p97 = scmp.ne.s32.totalorder %s88, %s89
    %p98 = scmp.eq.s32.totalorder %s15, 0
    %p99 = por %p97, %p98
    %p100 = scmp.ne.s32.totalorder %s88, %s89
    %p101 = scmp.eq.s32.totalorder %s16, 1
    %p102 = por %p100, %p101
    %p104 = scmp.ne.s32.totalorder %s89, %s103
    %p105 = scmp.eq.s32.totalorder %s16, 0
    %p106 = por %p104, %p105
    %s108 = sadd.s32 %s107, 1
    %p111 = scmp.eq.s32.totalorder %s10, 1
    %p112 = scmp.ne.s32.totalorder %s107, %s109
    %p113 = scmp.eq.s32.totalorder %s10, 0
    %p114 = por %p112, %p113
    %p115 = scmp.ne.s32.totalorder %s107, %s109
    %p116 = scmp.eq.s32.totalorder %s15, 1
    %p117 = por %p115, %p116
    %p118 = scmp.ne.s32.totalorder %s109, %s110
    %p119 = scmp.eq.s32.totalorder %s15, 0
    %p120 = por %p118, %p119
    %p121 = scmp.ne.s32.totalorder %s109, %s110
    %p122 = scmp.eq.s32.totalorder %s16, 1
    %p123 = por %p121, %p122
    %p125 = scmp.ne.s32.totalorder %s110, %s124
    %p126 = scmp.eq.s32.totalorder %s16, 0
    %p127 = por %p125, %p126
    %p128 = scmp.le.s32.totalorder 1, %s10
    %p129 = scmp.lt.s32.totalorder %s10, 3
    %p130 = pnand %p128, %p129
    %p131 = pneg %p130
    // Predicated region
    $region9: #{channel_deconv_forward.2} parent=5 // pred_check
      _
    $region10: #{channel_deconv_forward.2} parent=5 // pred_check_branch
      %133 = sbr.rel (%p130) target = $region12
    $region11: #{channel_deconv_forward.2} parent=5 // pred_region
      %s134 = ssub.s32 %s10, 1
    $region12: #{channel_deconv_forward.2} parent=5 // pred_fallthru
      _
    %p135 = scmp.lt.s32.totalorder %s10, 2
    // Predicated region
    $region13: #{channel_deconv_forward.2} parent=5 // pred_check
      %p136 = pneg %p135
    $region14: #{channel_deconv_forward.2} parent=5 // pred_check_branch
      %138 = sbr.rel (%p136) target = $region16
    $region15: #{channel_deconv_forward.2} parent=5 // pred_region
      // Predicated region
      $region17: #{channel_deconv_forward.2} parent=15 // pred_check
        %p139 = pneg %p44
      $region18: #{channel_deconv_forward.2} parent=15 // pred_check_branch
        %141 = sbr.rel (%p139) target = $region20
      $region19: #{channel_deconv_forward.2} parent=15 // pred_region
        %s142 = smul.u32 2, %s18
        %p143 = scmp.lt.s32.totalorder %s17, 1
        %s144 = scalar_select %p143, %s17, 1
        %p145 = scmp.lt.s32.totalorder %s142, 1
        %s146 = scalar_select %p145, %s142, 1
        %s147 = smul.addr %s144, 2
        %s148 = sadd.s32 %s146, %s147
        %s149 = smul.addr %s148, 4
        %s150 = scalar_lea.vmem %s0, %s149
        %s151 = smul.u32 2, %s18
      $region20: #{channel_deconv_forward.2} parent=15 // pred_fallthru
        _
      // Predicated region
      $region21: #{channel_deconv_forward.2} parent=15 // pred_check
        %p152 = pneg %p72
      $region22: #{channel_deconv_forward.2} parent=15 // pred_check_branch
        %154 = sbr.rel (%p152) target = $region24
      $region23: #{channel_deconv_forward.2} parent=15 // pred_region
        %s155 = smul.u32 2, %s18
        %p156 = scmp.lt.s32.totalorder %s17, 1
        %s157 = scalar_select %p156, %s17, 1
        %p158 = scmp.lt.s32.totalorder %s155, 1
        %s159 = scalar_select %p158, %s155, 1
        %s160 = smul.addr %s157, 2
        %s161 = sadd.s32 %s159, %s160
        %s162 = scalar_lea.vmem %s1, %s161
        %s163 = smul.u32 2, %s18
      $region24: #{channel_deconv_forward.2} parent=15 // pred_fallthru
        _
    $region16: #{channel_deconv_forward.2} parent=5 // pred_fallthru
      _
    %p164 = scmp.le.s32.totalorder 1, %s10
    %p165 = scmp.lt.s32.totalorder %s10, 3
    %p166 = pnand %p164, %p165
    %p167 = pneg %p166
    // Predicated region
    $region25: #{channel_deconv_forward.2} parent=5 // pred_check
      _
    $region26: #{channel_deconv_forward.2} parent=5 // pred_check_branch
      %169 = sbr.rel (%p166) target = $region28
    $region27: #{channel_deconv_forward.2} parent=5 // pred_region
      %s170 = ssub.s32 %s10, 1
      %s171 = smul.u32 2, %s20
      %p172 = scmp.lt.s32.totalorder %s19, 1
      %s173 = scalar_select %p172, %s19, 1
      %p174 = scmp.lt.s32.totalorder %s171, 1
      %s175 = scalar_select %p174, %s171, 1
      %s176 = smul.addr %s173, 2
      %s177 = sadd.s32 %s175, %s176
      %s178 = smul.addr %s177, 4
      %s179 = scalar_lea.vmem %s0, %s178
      %p180 = pneg %p50
      %p181 = pneg %p47
      %s182 = smul.u32 2, %s20
      %p183 = scmp.lt.s32.totalorder %s19, 1
      %s184 = scalar_select %p183, %s19, 1
      %p185 = scmp.lt.s32.totalorder %s182, 1
      %s186 = scalar_select %p185, %s182, 1
      %s187 = smul.addr %s184, 2
      %s188 = sadd.s32 %s186, %s187
      %s189 = scalar_lea.vmem %s1, %s188
      %p190 = pneg %p78
      %p191 = pneg %p75
      %p192 = pneg %p99
      %p193 = pneg %p96
      %p194 = pneg %p120
      %p195 = pneg %p117
      %s196 = smul.u32 2, %s20
      %p197 = scmp.lt.s32.totalorder %s19, 1
      %s198 = scalar_select %p197, %s19, 1
      %p199 = scmp.lt.s32.totalorder %s196, 1
      %s200 = scalar_select %p199, %s196, 1
      %s201 = smul.addr %s198, 2
      %s202 = sadd.s32 %s200, %s201
      %s203 = smul.addr %s202, 4
      %s204 = scalar_lea.vmem %s0, %s203
      %s205 = smul.u32 2, %s20
      %s206 = smul.u32 2, %s20
      %p207 = scmp.lt.s32.totalorder %s19, 1
      %s208 = scalar_select %p207, %s19, 1
      %p209 = scmp.lt.s32.totalorder %s206, 1
      %s210 = scalar_select %p209, %s206, 1
      %s211 = smul.addr %s208, 2
      %s212 = sadd.s32 %s210, %s211
      %s213 = scalar_lea.vmem %s1, %s212
      %s214 = smul.u32 2, %s20
      %p215 = scmp.eq.s32.totalorder %s19, 0
      %p216 = scmp.eq.s32.totalorder %s20, 0
      %p217 = pnand %p215, %p216
      %p218 = pneg %p217
      // Predicated region
      $region29: #{channel_deconv_forward.2} parent=27 // pred_check
        _
      $region30: #{channel_deconv_forward.2} parent=27 // pred_check_branch
        %220 = sbr.rel (%p217) target = $region32
      $region31: #{channel_deconv_forward.2} parent=27 // pred_region
        %vm221 = vcmask 3072
        %222 = vst.msk [vmem:[#allocation2] sm:$0xf] %vm221, 0.0
        %vm223 = vcmask 27648
        %224 = vst.msk [vmem:[#allocation3] sm:$0xf] %vm223, 0.0
      $region32: #{channel_deconv_forward.2} parent=27 // pred_fallthru
        _
      %v225 = vld [vmem:[%s204] sm:$0xff]
      %v226 = vld [vmem:[%s213] sm:$0x3]
      %v227 = vunpack.c.l.bf16 %v226
      %vm228 = vcmp.gt.f32.partialorder %v227, 0.0
      %v229 = vsel %vm228, 1, 0
      %v230 = vlaneseq
      %v231 = vshrl.u32 %v230, 7
      %v232 = vsub.s32 0, %v231
      %v233 = vrot.slane %v229, %v232
      %v234 = vlaneseq
      %v235 = vshrl.u32 %v234, 7
      %v236 = vsub.s32 2, %v235
      %v237 = vrot.slane %v229, %v236
      %v238 = vlaneseq
      %v239 = vshrl.u32 %v238, 7
      %v240 = vsub.s32 0, %v239
      %v241 = vrot.slane %v233, %v240
      %v242 = vlaneseq
      %v243 = vshrl.u32 %v242, 7
      %v244 = vsub.s32 0, %v243
      %v245 = vrot.slane %v237, %v244
      %vm246 = vcmp.eq.s32.totalorder %v241, 1
      %vm247 = vcmp.eq.s32.totalorder %v245, 1
      %v249 = vcombine.high %v225, %v225
      %v251 = vsel %vm246, %v225, 0.0
      %v252 = vsel %vm247, %v249, 0.0
      %v253 = vld [vmem:[#allocation2] sm:$0xf]
      %vm254 = vcmask 1043456
      %v255 = vsel %vm254, %v251, 0.0
      %v256 = vsel %vm254, %v252, 0.0
      %v257 = vadd.f32 %v255, %v256
      %258 = vadd.xlane.f32.xlu0 %v257
      %v259 = vpop.xlane.xlu0 %258
      %v260 = vadd.f32 %v253, %v259
      %vm261 = vcmask 3072
      %262 = vst.msk [vmem:[#allocation2] sm:$0xf] %vm261, %v260
      %v263 = vld [vmem:[#allocation3] sm:$0xf]
      %264 = vmatprep.subr.mxu0 %v252
      %265 = vmatpush1.xpose.msra.mxu0 %v251
      %266 = vmatprep.subr.mxu0 0.0
      %267 = vmatpush1.xpose.msra.mxu0 0.0
      %268 = vmatprep.subr.mxu0 0.0
      %269 = vmatpush1.xpose.msra.mxu0 0.0
      %270 = vmatprep.subr.mxu0 0.0
      %271 = vmatpush1.xpose.msra.mxu0 0.0
      %272 = vmatprep.subr.mxu0 0.0
      %273 = vmatpush1.xpose.msra.mxu0 0.0
      %274 = vmatprep.subr.mxu0 0.0
      %275 = vmatpush1.xpose.msra.mxu0 0.0
      %276 = vmatprep.subr.mxu0 0.0
      %277 = vmatpush1.xpose.msra.mxu0 0.0
      %278 = vmatprep.subr.mxu0 0.0
      %279 = vmatpush1.xpose.msra.mxu0 0.0
      %280 = vmatprep.subr.mxu0 0.0
      %281 = vmatpush1.xpose.msra.mxu0 0.0
      %282 = vmatprep.subr.mxu0 0.0
      %283 = vmatpush1.xpose.msra.mxu0 0.0
      %284 = vmatprep.subr.mxu0 0.0
      %285 = vmatpush1.xpose.msra.mxu0 0.0
      %286 = vmatprep.subr.mxu0 0.0
      %287 = vmatpush1.xpose.msra.mxu0 0.0
      %288 = vmatprep.subr.mxu0 0.0
      %289 = vmatpush1.xpose.msra.mxu0 0.0
      %290 = vmatprep.subr.mxu0 0.0
      %291 = vmatpush1.xpose.msra.mxu0 0.0
      %292 = vmatprep.subr.mxu0 0.0
      %293 = vmatpush1.xpose.msra.mxu0 0.0
      %294 = vmatprep.subr.mxu0 0.0
      %295 = vmatpush1.xpose.msra.mxu0 0.0
      %296 = vmatprep.subr.mxu0 0.0
      %297 = vmatpush1.xpose.msra.mxu0 0.0
      %298 = vmatprep.subr.mxu0 0.0
      %299 = vmatpush1.xpose.msra.mxu0 0.0
      %300 = vmatprep.subr.mxu0 0.0
      %301 = vmatpush1.xpose.msra.mxu0 0.0
      %302 = vmatprep.subr.mxu0 0.0
      %303 = vmatpush1.xpose.msra.mxu0 0.0
      %304 = vmatprep.subr.mxu0 0.0
      %305 = vmatpush1.xpose.msra.mxu0 0.0
      %306 = vmatprep.subr.mxu0 0.0
      %307 = vmatpush1.xpose.msra.mxu0 0.0
      %308 = vmatprep.subr.mxu0 0.0
      %309 = vmatpush1.xpose.msra.mxu0 0.0
      %310 = vmatprep.subr.mxu0 0.0
      %311 = vmatpush1.xpose.msra.mxu0 0.0
      %312 = vmatprep.subr.mxu0 0.0
      %313 = vmatpush1.xpose.msra.mxu0 0.0
      %314 = vmatprep.subr.mxu0 0.0
      %315 = vmatpush1.xpose.msra.mxu0 0.0
      %316 = vmatprep.subr.mxu0 0.0
      %317 = vmatpush1.xpose.msra.mxu0 0.0
      %318 = vmatprep.subr.mxu0 0.0
      %319 = vmatpush1.xpose.msra.mxu0 0.0
      %320 = vmatprep.subr.mxu0 0.0
      %321 = vmatpush1.xpose.msra.mxu0 0.0
      %322 = vmatprep.subr.mxu0 0.0
      %323 = vmatpush1.xpose.msra.mxu0 0.0
      %324 = vmatprep.subr.mxu0 0.0
      %325 = vmatpush1.xpose.msra.mxu0 0.0
      %326 = vmatprep.subr.mxu0 0.0
      %327 = vmatpush1.xpose.msra.mxu0 0.0
      %328 = vmatprep.mubr.f32.mxu0 %v252
      %329 = vmatmul.mubr.f32.gmra.mrb[0].mxu0 %v251
      %v330 = vpop.f32.mrb[0].mxu0
      %v331 = vadd.f32 0.0, %v330
      %v332 = vpop.f32.mrb[0].mxu0
      %333 = vdwg.mxu0
      %v334 = vadd.f32 %v263, %v331
      %vm335 = vcmask 27648
      %336 = vst.msk [vmem:[#allocation3] sm:$0xf] %vm335, %v334
      %p337 = scmp.eq.s32.totalorder %s19, 1
      %p338 = pnand %p337, %p216
      %p339 = pneg %p338
      // Predicated region
      $region33: #{channel_deconv_forward.2} parent=27 // pred_check
        _
      $region34: #{channel_deconv_forward.2} parent=27 // pred_check_branch
        %341 = sbr.rel (%p338) target = $region36
      $region35: #{channel_deconv_forward.2} parent=27 // pred_region
        %v342 = vlaneseq
        %v343 = vshrl.u32 %v342, 7
        %v344 = vlaneseq
        %v345 = vand.u32 %v344, 127
        %vm346 = vcmp.eq.s32.totalorder %v343, %v345
        %v347 = vsel %vm346, 1, 0
        %v348 = vcvt.s32.f32 %v347
        %v349 = vld [vmem:[#allocation3] sm:$0xf]
        %v350 = vmul.f32 %v349, 0.01754386
        %v351 = vmul.f32 %v348, 0.01
        %v352 = vadd.f32 %v350, %v351
        %v353 = vmul.f32 %v352, %v352
        %v354 = vsel %vm335, %v353, 0.0
        %355 = vadd.xlane.f32.xlu0 %v354
        %v356 = vpop.xlane.xlu0 %355
        %v357 = vrot.slane %v356, 4
        %v358 = vadd.f32 %v356, %v357
        %v359 = vrot.slane %v358, 2
        %v360 = vadd.f32 %v358, %v359
        %v361 = vrot.slane %v360, 1
        %v362 = vadd.f32 %v360, %v361
        %s363 = vtos %v362
        %v364 = vstv %s363
        %v365 = vrsqrt.pop %v364
        %v366 = vmul.f32 %v364, %v365
        %vm367 = vcmp.eq.f32.partialorder %v364, inf
        %v368 = vsel %vm367, %v364, %v366
        %vm369 = vcmp.eq.f32.partialorder %v364, 0.0
        %v370 = vand.u32 %v364, 2147483648
        %v371 = vsel %vm369, %v370, %v368
        %s372 = vtos %v371
        %v373 = vstv %s372
        %v374 = vrcp.pop %v373
        %v375 = vmul.f32 %v352, %v374
        %v376 = vmul.f32 %v348, 3.0
        %vm377 = vcmask 31744
        %v379 = vsel %vm377, %v348, 0
        %v382 = vsel %vm254, %v375, 0
        %384 = vmatprep.subr.mxu0 0.0
        %385 = vmatpush1.msra.mxu0 %v382
        %386 = vmatprep.subr.mxu0 0.0
        %387 = vmatpush1.msra.mxu0 0.0
        %388 = vmatprep.subr.mxu0 0.0
        %389 = vmatpush1.msra.mxu0 0.0
        %390 = vmatprep.subr.mxu0 0.0
        %391 = vmatpush1.msra.mxu0 0.0
        %392 = vmatprep.subr.mxu0 0.0
        %393 = vmatpush1.msra.mxu0 0.0
        %394 = vmatprep.subr.mxu0 0.0
        %395 = vmatpush1.msra.mxu0 0.0
        %396 = vmatprep.subr.mxu0 0.0
        %397 = vmatpush1.msra.mxu0 0.0
        %398 = vmatprep.subr.mxu0 0.0
        %399 = vmatpush1.msra.mxu0 0.0
        %400 = vmatprep.subr.mxu0 0.0
        %401 = vmatpush1.msra.mxu0 0.0
        %402 = vmatprep.subr.mxu0 0.0
        %403 = vmatpush1.msra.mxu0 0.0
        %404 = vmatprep.subr.mxu0 0.0
        %405 = vmatpush1.msra.mxu0 0.0
        %406 = vmatprep.subr.mxu0 0.0
        %407 = vmatpush1.msra.mxu0 0.0
        %408 = vmatprep.subr.mxu0 0.0
        %409 = vmatpush1.msra.mxu0 0.0
        %410 = vmatprep.subr.mxu0 0.0
        %411 = vmatpush1.msra.mxu0 0.0
        %412 = vmatprep.subr.mxu0 0.0
        %413 = vmatpush1.msra.mxu0 0.0
        %414 = vmatprep.subr.mxu0 0.0
        %415 = vmatpush1.msra.mxu0 0.0
        %416 = vmatprep.subr.mxu0 0.0
        %417 = vmatpush1.msra.mxu0 0.0
        %418 = vmatprep.subr.mxu0 0.0
        %419 = vmatpush1.msra.mxu0 0.0
        %420 = vmatprep.subr.mxu0 0.0
        %421 = vmatpush1.msra.mxu0 0.0
        %422 = vmatprep.subr.mxu0 0.0
        %423 = vmatpush1.msra.mxu0 0.0
        %424 = vmatprep.subr.mxu0 0.0
        %425 = vmatpush1.msra.mxu0 0.0
        %426 = vmatprep.subr.mxu0 0.0
        %427 = vmatpush1.msra.mxu0 0.0
        %428 = vmatprep.subr.mxu0 0.0
        %429 = vmatpush1.msra.mxu0 0.0
        %430 = vmatprep.subr.mxu0 0.0
        %431 = vmatpush1.msra.mxu0 0.0
        %432 = vmatprep.subr.mxu0 0.0
        %433 = vmatpush1.msra.mxu0 0.0
        %434 = vmatprep.subr.mxu0 0.0
        %435 = vmatpush1.msra.mxu0 0.0
        %436 = vmatprep.subr.mxu0 0.0
        %437 = vmatpush1.msra.mxu0 0.0
        %438 = vmatprep.subr.mxu0 0.0
        %439 = vmatpush1.msra.mxu0 0.0
        %440 = vmatprep.subr.mxu0 0.0
        %441 = vmatpush1.msra.mxu0 0.0
        %442 = vmatprep.subr.mxu0 0.0
        %443 = vmatpush1.msra.mxu0 0.0
        %444 = vmatprep.subr.mxu0 0.0
        %445 = vmatpush1.msra.mxu0 0.0
        %446 = vmatprep.subr.mxu0 0.0
        %447 = vmatpush1.msra.mxu0 0.0
        %448 = vmatprep.mubr.f32.mxu0 0.0
        %449 = vmatmul.mubr.f32.gmra.mrb[0].mxu0 %v379
        %v450 = vpop.f32.mrb[0].mxu0
        %v451 = vadd.f32 0.0, %v450
        %v452 = vpop.f32.mrb[0].mxu0
        %453 = vdwg.mxu0
        %v454 = vsub.f32 %v376, %v451
        %v455 = vmul.f32 %v454, 0.5
        %v456 = vsel %vm377, %v375, 0
        %v459 = vsel %vm254, %v455, 0
        %461 = vmatprep.subr.mxu0 0.0
        %462 = vmatpush1.msra.mxu0 %v459
        %463 = vmatprep.subr.mxu0 0.0
        %464 = vmatpush1.msra.mxu0 0.0
        %465 = vmatprep.subr.mxu0 0.0
        %466 = vmatpush1.msra.mxu0 0.0
        %467 = vmatprep.subr.mxu0 0.0
        %468 = vmatpush1.msra.mxu0 0.0
        %469 = vmatprep.subr.mxu0 0.0
        %470 = vmatpush1.msra.mxu0 0.0
        %471 = vmatprep.subr.mxu0 0.0
        %472 = vmatpush1.msra.mxu0 0.0
        %473 = vmatprep.subr.mxu0 0.0
        %474 = vmatpush1.msra.mxu0 0.0
        %475 = vmatprep.subr.mxu0 0.0
        %476 = vmatpush1.msra.mxu0 0.0
        %477 = vmatprep.subr.mxu0 0.0
        %478 = vmatpush1.msra.mxu0 0.0
        %479 = vmatprep.subr.mxu0 0.0
        %480 = vmatpush1.msra.mxu0 0.0
        %481 = vmatprep.subr.mxu0 0.0
        %482 = vmatpush1.msra.mxu0 0.0
        %483 = vmatprep.subr.mxu0 0.0
        %484 = vmatpush1.msra.mxu0 0.0
        %485 = vmatprep.subr.mxu0 0.0
        %486 = vmatpush1.msra.mxu0 0.0
        %487 = vmatprep.subr.mxu0 0.0
        %488 = vmatpush1.msra.mxu0 0.0
        %489 = vmatprep.subr.mxu0 0.0
        %490 = vmatpush1.msra.mxu0 0.0
        %491 = vmatprep.subr.mxu0 0.0
        %492 = vmatpush1.msra.mxu0 0.0
        %493 = vmatprep.subr.mxu0 0.0
        %494 = vmatpush1.msra.mxu0 0.0
        %495 = vmatprep.subr.mxu0 0.0
        %496 = vmatpush1.msra.mxu0 0.0
        %497 = vmatprep.subr.mxu0 0.0
        %498 = vmatpush1.msra.mxu0 0.0
        %499 = vmatprep.subr.mxu0 0.0
        %500 = vmatpush1.msra.mxu0 0.0
        %501 = vmatprep.subr.mxu0 0.0
        %502 = vmatpush1.msra.mxu0 0.0
        %503 = vmatprep.subr.mxu0 0.0
        %504 = vmatpush1.msra.mxu0 0.0
        %505 = vmatprep.subr.mxu0 0.0
        %506 = vmatpush1.msra.mxu0 0.0
        %507 = vmatprep.subr.mxu0 0.0
        %508 = vmatpush1.msra.mxu0 0.0
        %509 = vmatprep.subr.mxu0 0.0
        %510 = vmatpush1.msra.mxu0 0.0
        %511 = vmatprep.subr.mxu0 0.0
        %512 = vmatpush1.msra.mxu0 0.0
        %513 = vmatprep.subr.mxu0 0.0
        %514 = vmatpush1.msra.mxu0 0.0
        %515 = vmatprep.subr.mxu0 0.0
        %516 = vmatpush1.msra.mxu0 0.0
        %517 = vmatprep.subr.mxu0 0.0
        %518 = vmatpush1.msra.mxu0 0.0
        %519 = vmatprep.subr.mxu0 0.0
        %520 = vmatpush1.msra.mxu0 0.0
        %521 = vmatprep.subr.mxu0 0.0
        %522 = vmatpush1.msra.mxu0 0.0
        %523 = vmatprep.subr.mxu0 0.0
        %524 = vmatpush1.msra.mxu0 0.0
        %525 = vmatprep.mubr.f32.mxu0 0.0
        %526 = vmatmul.mubr.f32.gmra.mrb[0].mxu0 %v456
        %v527 = vpop.f32.mrb[0].mxu0
        %v528 = vadd.f32 0.0, %v527
        %v529 = vpop.f32.mrb[0].mxu0
        %530 = vdwg.mxu0
        %v531 = vsel %vm377, %v455, 0
        %v533 = vsel %vm254, %v348, 0
        %535 = vmatprep.subr.mxu0 0.0
        %536 = vmatpush1.msra.mxu0 %v533
        %537 = vmatprep.subr.mxu0 0.0
        %538 = vmatpush1.msra.mxu0 0.0
        %539 = vmatprep.subr.mxu0 0.0
        %540 = vmatpush1.msra.mxu0 0.0
        %541 = vmatprep.subr.mxu0 0.0
        %542 = vmatpush1.msra.mxu0 0.0
        %543 = vmatprep.subr.mxu0 0.0
        %544 = vmatpush1.msra.mxu0 0.0
        %545 = vmatprep.subr.mxu0 0.0
        %546 = vmatpush1.msra.mxu0 0.0
        %547 = vmatprep.subr.mxu0 0.0
        %548 = vmatpush1.msra.mxu0 0.0
        %549 = vmatprep.subr.mxu0 0.0
        %550 = vmatpush1.msra.mxu0 0.0
        %551 = vmatprep.subr.mxu0 0.0
        %552 = vmatpush1.msra.mxu0 0.0
        %553 = vmatprep.subr.mxu0 0.0
        %554 = vmatpush1.msra.mxu0 0.0
        %555 = vmatprep.subr.mxu0 0.0
        %556 = vmatpush1.msra.mxu0 0.0
        %557 = vmatprep.subr.mxu0 0.0
        %558 = vmatpush1.msra.mxu0 0.0
        %559 = vmatprep.subr.mxu0 0.0
        %560 = vmatpush1.msra.mxu0 0.0
        %561 = vmatprep.subr.mxu0 0.0
        %562 = vmatpush1.msra.mxu0 0.0
        %563 = vmatprep.subr.mxu0 0.0
        %564 = vmatpush1.msra.mxu0 0.0
        %565 = vmatprep.subr.mxu0 0.0
        %566 = vmatpush1.msra.mxu0 0.0
        %567 = vmatprep.subr.mxu0 0.0
        %568 = vmatpush1.msra.mxu0 0.0
        %569 = vmatprep.subr.mxu0 0.0
        %570 = vmatpush1.msra.mxu0 0.0
        %571 = vmatprep.subr.mxu0 0.0
        %572 = vmatpush1.msra.mxu0 0.0
        %573 = vmatprep.subr.mxu0 0.0
        %574 = vmatpush1.msra.mxu0 0.0
        %575 = vmatprep.subr.mxu0 0.0
        %576 = vmatpush1.msra.mxu0 0.0
        %577 = vmatprep.subr.mxu0 0.0
        %578 = vmatpush1.msra.mxu0 0.0
        %579 = vmatprep.subr.mxu0 0.0
        %580 = vmatpush1.msra.mxu0 0.0
        %581 = vmatprep.subr.mxu0 0.0
        %582 = vmatpush1.msra.mxu0 0.0
        %583 = vmatprep.subr.mxu0 0.0
        %584 = vmatpush1.msra.mxu0 0.0
        %585 = vmatprep.subr.mxu0 0.0
        %586 = vmatpush1.msra.mxu0 0.0
        %587 = vmatprep.subr.mxu0 0.0
        %588 = vmatpush1.msra.mxu0 0.0
        %589 = vmatprep.subr.mxu0 0.0
        %590 = vmatpush1.msra.mxu0 0.0
        %591 = vmatprep.subr.mxu0 0.0
        %592 = vmatpush1.msra.mxu0 0.0
        %593 = vmatprep.subr.mxu0 0.0
        %594 = vmatpush1.msra.mxu0 0.0
        %595 = vmatprep.subr.mxu0 0.0
        %596 = vmatpush1.msra.mxu0 0.0
        %597 = vmatprep.subr.mxu0 0.0
        %598 = vmatpush1.msra.mxu0 0.0
        %599 = vmatprep.mubr.f32.mxu0 0.0
        %600 = vmatmul.mubr.f32.gmra.mrb[0].mxu0 %v531
        %v601 = vpop.f32.mrb[0].mxu0
        %v602 = vadd.f32 0.0, %v601
        %v603 = vpop.f32.mrb[0].mxu0
        %604 = vdwg.mxu0
        %v606 = vsel %vm377, %v602, 0
        %v609 = vsel %vm254, %v528, 0
        %611 = vmatprep.subr.mxu0 0.0
        %612 = vmatpush1.msra.mxu0 %v609
        %613 = vmatprep.subr.mxu0 0.0
        %614 = vmatpush1.msra.mxu0 0.0
        %615 = vmatprep.subr.mxu0 0.0
        %616 = vmatpush1.msra.mxu0 0.0
        %617 = vmatprep.subr.mxu0 0.0
        %618 = vmatpush1.msra.mxu0 0.0
        %619 = vmatprep.subr.mxu0 0.0
        %620 = vmatpush1.msra.mxu0 0.0
        %621 = vmatprep.subr.mxu0 0.0
        %622 = vmatpush1.msra.mxu0 0.0
        %623 = vmatprep.subr.mxu0 0.0
        %624 = vmatpush1.msra.mxu0 0.0
        %625 = vmatprep.subr.mxu0 0.0
        %626 = vmatpush1.msra.mxu0 0.0
        %627 = vmatprep.subr.mxu0 0.0
        %628 = vmatpush1.msra.mxu0 0.0
        %629 = vmatprep.subr.mxu0 0.0
        %630 = vmatpush1.msra.mxu0 0.0
        %631 = vmatprep.subr.mxu0 0.0
        %632 = vmatpush1.msra.mxu0 0.0
        %633 = vmatprep.subr.mxu0 0.0
        %634 = vmatpush1.msra.mxu0 0.0
        %635 = vmatprep.subr.mxu0 0.0
        %636 = vmatpush1.msra.mxu0 0.0
        %637 = vmatprep.subr.mxu0 0.0
        %638 = vmatpush1.msra.mxu0 0.0
        %639 = vmatprep.subr.mxu0 0.0
        %640 = vmatpush1.msra.mxu0 0.0
        %641 = vmatprep.subr.mxu0 0.0
        %642 = vmatpush1.msra.mxu0 0.0
        %643 = vmatprep.subr.mxu0 0.0
        %644 = vmatpush1.msra.mxu0 0.0
        %645 = vmatprep.subr.mxu0 0.0
        %646 = vmatpush1.msra.mxu0 0.0
        %647 = vmatprep.subr.mxu0 0.0
        %648 = vmatpush1.msra.mxu0 0.0
        %649 = vmatprep.subr.mxu0 0.0
        %650 = vmatpush1.msra.mxu0 0.0
        %651 = vmatprep.subr.mxu0 0.0
        %652 = vmatpush1.msra.mxu0 0.0
        %653 = vmatprep.subr.mxu0 0.0
        %654 = vmatpush1.msra.mxu0 0.0
        %655 = vmatprep.subr.mxu0 0.0
        %656 = vmatpush1.msra.mxu0 0.0
        %657 = vmatprep.subr.mxu0 0.0
        %658 = vmatpush1.msra.mxu0 0.0
        %659 = vmatprep.subr.mxu0 0.0
        %660 = vmatpush1.msra.mxu0 0.0
        %661 = vmatprep.subr.mxu0 0.0
        %662 = vmatpush1.msra.mxu0 0.0
        %663 = vmatprep.subr.mxu0 0.0
        %664 = vmatpush1.msra.mxu0 0.0
        %665 = vmatprep.subr.mxu0 0.0
        %666 = vmatpush1.msra.mxu0 0.0
        %667 = vmatprep.subr.mxu0 0.0
        %668 = vmatpush1.msra.mxu0 0.0
        %669 = vmatprep.subr.mxu0 0.0
        %670 = vmatpush1.msra.mxu0 0.0
        %671 = vmatprep.subr.mxu0 0.0
        %672 = vmatpush1.msra.mxu0 0.0
        %673 = vmatprep.subr.mxu0 0.0
        %674 = vmatpush1.msra.mxu0 0.0
        %675 = vmatprep.mubr.f32.mxu0 0.0
        %676 = vmatmul.mubr.f32.gmra.mrb[0].mxu0 %v606
        %v677 = vpop.f32.mrb[0].mxu0
        %v678 = vadd.f32 0.0, %v677
        %v679 = vpop.f32.mrb[0].mxu0
        %680 = vdwg.mxu0
        %v681 = vsub.f32 %v376, %v678
        %v682 = vmul.f32 %v681, 0.5
        %v683 = vsel %vm377, %v528, 0
        %v686 = vsel %vm254, %v682, 0
        %688 = vmatprep.subr.mxu0 0.0
        %689 = vmatpush1.msra.mxu0 %v686
        %690 = vmatprep.subr.mxu0 0.0
        %691 = vmatpush1.msra.mxu0 0.0
        %692 = vmatprep.subr.mxu0 0.0
        %693 = vmatpush1.msra.mxu0 0.0
        %694 = vmatprep.subr.mxu0 0.0
        %695 = vmatpush1.msra.mxu0 0.0
        %696 = vmatprep.subr.mxu0 0.0
        %697 = vmatpush1.msra.mxu0 0.0
        %698 = vmatprep.subr.mxu0 0.0
        %699 = vmatpush1.msra.mxu0 0.0
        %700 = vmatprep.subr.mxu0 0.0
        %701 = vmatpush1.msra.mxu0 0.0
        %702 = vmatprep.subr.mxu0 0.0
        %703 = vmatpush1.msra.mxu0 0.0
        %704 = vmatprep.subr.mxu0 0.0
        %705 = vmatpush1.msra.mxu0 0.0
        %706 = vmatprep.subr.mxu0 0.0
        %707 = vmatpush1.msra.mxu0 0.0
        %708 = vmatprep.subr.mxu0 0.0
        %709 = vmatpush1.msra.mxu0 0.0
        %710 = vmatprep.subr.mxu0 0.0
        %711 = vmatpush1.msra.mxu0 0.0
        %712 = vmatprep.subr.mxu0 0.0
        %713 = vmatpush1.msra.mxu0 0.0
        %714 = vmatprep.subr.mxu0 0.0
        %715 = vmatpush1.msra.mxu0 0.0
        %716 = vmatprep.subr.mxu0 0.0
        %717 = vmatpush1.msra.mxu0 0.0
        %718 = vmatprep.subr.mxu0 0.0
        %719 = vmatpush1.msra.mxu0 0.0
        %720 = vmatprep.subr.mxu0 0.0
        %721 = vmatpush1.msra.mxu0 0.0
        %722 = vmatprep.subr.mxu0 0.0
        %723 = vmatpush1.msra.mxu0 0.0
        %724 = vmatprep.subr.mxu0 0.0
        %725 = vmatpush1.msra.mxu0 0.0
        %726 = vmatprep.subr.mxu0 0.0
        %727 = vmatpush1.msra.mxu0 0.0
        %728 = vmatprep.subr.mxu0 0.0
        %729 = vmatpush1.msra.mxu0 0.0
        %730 = vmatprep.subr.mxu0 0.0
        %731 = vmatpush1.msra.mxu0 0.0
        %732 = vmatprep.subr.mxu0 0.0
        %733 = vmatpush1.msra.mxu0 0.0
        %734 = vmatprep.subr.mxu0 0.0
        %735 = vmatpush1.msra.mxu0 0.0
        %736 = vmatprep.subr.mxu0 0.0
        %737 = vmatpush1.msra.mxu0 0.0
        %738 = vmatprep.subr.mxu0 0.0
        %739 = vmatpush1.msra.mxu0 0.0
        %740 = vmatprep.subr.mxu0 0.0
        %741 = vmatpush1.msra.mxu0 0.0
        %742 = vmatprep.subr.mxu0 0.0
        %743 = vmatpush1.msra.mxu0 0.0
        %744 = vmatprep.subr.mxu0 0.0
        %745 = vmatpush1.msra.mxu0 0.0
        %746 = vmatprep.subr.mxu0 0.0
        %747 = vmatpush1.msra.mxu0 0.0
        %748 = vmatprep.subr.mxu0 0.0
        %749 = vmatpush1.msra.mxu0 0.0
        %750 = vmatprep.subr.mxu0 0.0
        %751 = vmatpush1.msra.mxu0 0.0
        %752 = vmatprep.mubr.f32.mxu0 0.0
        %753 = vmatmul.mubr.f32.gmra.mrb[0].mxu0 %v683
        %v754 = vpop.f32.mrb[0].mxu0
        %v755 = vadd.f32 0.0, %v754
        %v756 = vpop.f32.mrb[0].mxu0
        %757 = vdwg.mxu0
        %v758 = vsel %vm377, %v682, 0
        %v760 = vsel %vm254, %v602, 0
        %762 = vmatprep.subr.mxu0 0.0
        %763 = vmatpush1.msra.mxu0 %v760
        %764 = vmatprep.subr.mxu0 0.0
        %765 = vmatpush1.msra.mxu0 0.0
        %766 = vmatprep.subr.mxu0 0.0
        %767 = vmatpush1.msra.mxu0 0.0
        %768 = vmatprep.subr.mxu0 0.0
        %769 = vmatpush1.msra.mxu0 0.0
        %770 = vmatprep.subr.mxu0 0.0
        %771 = vmatpush1.msra.mxu0 0.0
        %772 = vmatprep.subr.mxu0 0.0
        %773 = vmatpush1.msra.mxu0 0.0
        %774 = vmatprep.subr.mxu0 0.0
        %775 = vmatpush1.msra.mxu0 0.0
        %776 = vmatprep.subr.mxu0 0.0
        %777 = vmatpush1.msra.mxu0 0.0
        %778 = vmatprep.subr.mxu0 0.0
        %779 = vmatpush1.msra.mxu0 0.0
        %780 = vmatprep.subr.mxu0 0.0
        %781 = vmatpush1.msra.mxu0 0.0
        %782 = vmatprep.subr.mxu0 0.0
        %783 = vmatpush1.msra.mxu0 0.0
        %784 = vmatprep.subr.mxu0 0.0
        %785 = vmatpush1.msra.mxu0 0.0
        %786 = vmatprep.subr.mxu0 0.0
        %787 = vmatpush1.msra.mxu0 0.0
        %788 = vmatprep.subr.mxu0 0.0
        %789 = vmatpush1.msra.mxu0 0.0
        %790 = vmatprep.subr.mxu0 0.0
        %791 = vmatpush1.msra.mxu0 0.0
        %792 = vmatprep.subr.mxu0 0.0
        %793 = vmatpush1.msra.mxu0 0.0
        %794 = vmatprep.subr.mxu0 0.0
        %795 = vmatpush1.msra.mxu0 0.0
        %796 = vmatprep.subr.mxu0 0.0
        %797 = vmatpush1.msra.mxu0 0.0
        %798 = vmatprep.subr.mxu0 0.0
        %799 = vmatpush1.msra.mxu0 0.0
        %800 = vmatprep.subr.mxu0 0.0
        %801 = vmatpush1.msra.mxu0 0.0
        %802 = vmatprep.subr.mxu0 0.0
        %803 = vmatpush1.msra.mxu0 0.0
        %804 = vmatprep.subr.mxu0 0.0
        %805 = vmatpush1.msra.mxu0 0.0
        %806 = vmatprep.subr.mxu0 0.0
        %807 = vmatpush1.msra.mxu0 0.0
        %808 = vmatprep.subr.mxu0 0.0
        %809 = vmatpush1.msra.mxu0 0.0
        %810 = vmatprep.subr.mxu0 0.0
        %811 = vmatpush1.msra.mxu0 0.0
        %812 = vmatprep.subr.mxu0 0.0
        %813 = vmatpush1.msra.mxu0 0.0
        %814 = vmatprep.subr.mxu0 0.0
        %815 = vmatpush1.msra.mxu0 0.0
        %816 = vmatprep.subr.mxu0 0.0
        %817 = vmatpush1.msra.mxu0 0.0
        %818 = vmatprep.subr.mxu0 0.0
        %819 = vmatpush1.msra.mxu0 0.0
        %820 = vmatprep.subr.mxu0 0.0
        %821 = vmatpush1.msra.mxu0 0.0
        %822 = vmatprep.subr.mxu0 0.0
        %823 = vmatpush1.msra.mxu0 0.0
        %824 = vmatprep.subr.mxu0 0.0
        %825 = vmatpush1.msra.mxu0 0.0
        %826 = vmatprep.mubr.f32.mxu0 0.0
        %827 = vmatmul.mubr.f32.gmra.mrb[0].mxu0 %v758
        %v828 = vpop.f32.mrb[0].mxu0
        %v829 = vadd.f32 0.0, %v828
        %v830 = vpop.f32.mrb[0].mxu0
        %831 = vdwg.mxu0
        %v833 = vsel %vm377, %v829, 0
        %v836 = vsel %vm254, %v755, 0
        %838 = vmatprep.subr.mxu0 0.0
        %839 = vmatpush1.msra.mxu0 %v836
        %840 = vmatprep.subr.mxu0 0.0
        %841 = vmatpush1.msra.mxu0 0.0
        %842 = vmatprep.subr.mxu0 0.0
        %843 = vmatpush1.msra.mxu0 0.0
        %844 = vmatprep.subr.mxu0 0.0
        %845 = vmatpush1.msra.mxu0 0.0
        %846 = vmatprep.subr.mxu0 0.0
        %847 = vmatpush1.msra.mxu0 0.0
        %848 = vmatprep.subr.mxu0 0.0
        %849 = vmatpush1.msra.mxu0 0.0
        %850 = vmatprep.subr.mxu0 0.0
        %851 = vmatpush1.msra.mxu0 0.0
        %852 = vmatprep.subr.mxu0 0.0
        %853 = vmatpush1.msra.mxu0 0.0
        %854 = vmatprep.subr.mxu0 0.0
        %855 = vmatpush1.msra.mxu0 0.0
        %856 = vmatprep.subr.mxu0 0.0
        %857 = vmatpush1.msra.mxu0 0.0
        %858 = vmatprep.subr.mxu0 0.0
        %859 = vmatpush1.msra.mxu0 0.0
        %860 = vmatprep.subr.mxu0 0.0
        %861 = vmatpush1.msra.mxu0 0.0
        %862 = vmatprep.subr.mxu0 0.0
        %863 = vmatpush1.msra.mxu0 0.0
        %864 = vmatprep.subr.mxu0 0.0
        %865 = vmatpush1.msra.mxu0 0.0
        %866 = vmatprep.subr.mxu0 0.0
        %867 = vmatpush1.msra.mxu0 0.0
        %868 = vmatprep.subr.mxu0 0.0
        %869 = vmatpush1.msra.mxu0 0.0
        %870 = vmatprep.subr.mxu0 0.0
        %871 = vmatpush1.msra.mxu0 0.0
        %872 = vmatprep.subr.mxu0 0.0
        %873 = vmatpush1.msra.mxu0 0.0
        %874 = vmatprep.subr.mxu0 0.0
        %875 = vmatpush1.msra.mxu0 0.0
        %876 = vmatprep.subr.mxu0 0.0
        %877 = vmatpush1.msra.mxu0 0.0
        %878 = vmatprep.subr.mxu0 0.0
        %879 = vmatpush1.msra.mxu0 0.0
        %880 = vmatprep.subr.mxu0 0.0
        %881 = vmatpush1.msra.mxu0 0.0
        %882 = vmatprep.subr.mxu0 0.0
        %883 = vmatpush1.msra.mxu0 0.0
        %884 = vmatprep.subr.mxu0 0.0
        %885 = vmatpush1.msra.mxu0 0.0
        %886 = vmatprep.subr.mxu0 0.0
        %887 = vmatpush1.msra.mxu0 0.0
        %888 = vmatprep.subr.mxu0 0.0
        %889 = vmatpush1.msra.mxu0 0.0
        %890 = vmatprep.subr.mxu0 0.0
        %891 = vmatpush1.msra.mxu0 0.0
        %892 = vmatprep.subr.mxu0 0.0
        %893 = vmatpush1.msra.mxu0 0.0
        %894 = vmatprep.subr.mxu0 0.0
        %895 = vmatpush1.msra.mxu0 0.0
        %896 = vmatprep.subr.mxu0 0.0
        %897 = vmatpush1.msra.mxu0 0.0
        %898 = vmatprep.subr.mxu0 0.0
        %899 = vmatpush1.msra.mxu0 0.0
        %900 = vmatprep.subr.mxu0 0.0
        %901 = vmatpush1.msra.mxu0 0.0
        %902 = vmatprep.mubr.f32.mxu0 0.0
        %903 = vmatmul.mubr.f32.gmra.mrb[0].mxu0 %v833
        %v904 = vpop.f32.mrb[0].mxu0
        %v905 = vadd.f32 0.0, %v904
        %v906 = vpop.f32.mrb[0].mxu0
        %907 = vdwg.mxu0
        %v908 = vsub.f32 %v376, %v905
        %v909 = vmul.f32 %v908, 0.5
        %v910 = vsel %vm377, %v755, 0
        %v913 = vsel %vm254, %v909, 0
        %915 = vmatprep.subr.mxu0 0.0
        %916 = vmatpush1.msra.mxu0 %v913
        %917 = vmatprep.subr.mxu0 0.0
        %918 = vmatpush1.msra.mxu0 0.0
        %919 = vmatprep.subr.mxu0 0.0
        %920 = vmatpush1.msra.mxu0 0.0
        %921 = vmatprep.subr.mxu0 0.0
        %922 = vmatpush1.msra.mxu0 0.0
        %923 = vmatprep.subr.mxu0 0.0
        %924 = vmatpush1.msra.mxu0 0.0
        %925 = vmatprep.subr.mxu0 0.0
        %926 = vmatpush1.msra.mxu0 0.0
        %927 = vmatprep.subr.mxu0 0.0
        %928 = vmatpush1.msra.mxu0 0.0
        %929 = vmatprep.subr.mxu0 0.0
        %930 = vmatpush1.msra.mxu0 0.0
        %931 = vmatprep.subr.mxu0 0.0
        %932 = vmatpush1.msra.mxu0 0.0
        %933 = vmatprep.subr.mxu0 0.0
        %934 = vmatpush1.msra.mxu0 0.0
        %935 = vmatprep.subr.mxu0 0.0
        %936 = vmatpush1.msra.mxu0 0.0
        %937 = vmatprep.subr.mxu0 0.0
        %938 = vmatpush1.msra.mxu0 0.0
        %939 = vmatprep.subr.mxu0 0.0
        %940 = vmatpush1.msra.mxu0 0.0
        %941 = vmatprep.subr.mxu0 0.0
        %942 = vmatpush1.msra.mxu0 0.0
        %943 = vmatprep.subr.mxu0 0.0
        %944 = vmatpush1.msra.mxu0 0.0
        %945 = vmatprep.subr.mxu0 0.0
        %946 = vmatpush1.msra.mxu0 0.0
        %947 = vmatprep.subr.mxu0 0.0
        %948 = vmatpush1.msra.mxu0 0.0
        %949 = vmatprep.subr.mxu0 0.0
        %950 = vmatpush1.msra.mxu0 0.0
        %951 = vmatprep.subr.mxu0 0.0
        %952 = vmatpush1.msra.mxu0 0.0
        %953 = vmatprep.subr.mxu0 0.0
        %954 = vmatpush1.msra.mxu0 0.0
        %955 = vmatprep.subr.mxu0 0.0
        %956 = vmatpush1.msra.mxu0 0.0
        %957 = vmatprep.subr.mxu0 0.0
        %958 = vmatpush1.msra.mxu0 0.0
        %959 = vmatprep.subr.mxu0 0.0
        %960 = vmatpush1.msra.mxu0 0.0
        %961 = vmatprep.subr.mxu0 0.0
        %962 = vmatpush1.msra.mxu0 0.0
        %963 = vmatprep.subr.mxu0 0.0
        %964 = vmatpush1.msra.mxu0 0.0
        %965 = vmatprep.subr.mxu0 0.0
        %966 = vmatpush1.msra.mxu0 0.0
        %967 = vmatprep.subr.mxu0 0.0
        %968 = vmatpush1.msra.mxu0 0.0
        %969 = vmatprep.subr.mxu0 0.0
        %970 = vmatpush1.msra.mxu0 0.0
        %971 = vmatprep.subr.mxu0 0.0
        %972 = vmatpush1.msra.mxu0 0.0
        %973 = vmatprep.subr.mxu0 0.0
        %974 = vmatpush1.msra.mxu0 0.0
        %975 = vmatprep.subr.mxu0 0.0
        %976 = vmatpush1.msra.mxu0 0.0
        %977 = vmatprep.subr.mxu0 0.0
        %978 = vmatpush1.msra.mxu0 0.0
        %979 = vmatprep.mubr.f32.mxu0 0.0
        %980 = vmatmul.mubr.f32.gmra.mrb[0].mxu0 %v910
        %v981 = vpop.f32.mrb[0].mxu0
        %v982 = vadd.f32 0.0, %v981
        %v983 = vpop.f32.mrb[0].mxu0
        %984 = vdwg.mxu0
        %v985 = vsel %vm377, %v909, 0
        %v987 = vsel %vm254, %v829, 0
        %989 = vmatprep.subr.mxu0 0.0
        %990 = vmatpush1.msra.mxu0 %v987
        %991 = vmatprep.subr.mxu0 0.0
        %992 = vmatpush1.msra.mxu0 0.0
        %993 = vmatprep.subr.mxu0 0.0
        %994 = vmatpush1.msra.mxu0 0.0
        %995 = vmatprep.subr.mxu0 0.0
        %996 = vmatpush1.msra.mxu0 0.0
        %997 = vmatprep.subr.mxu0 0.0
        %998 = vmatpush1.msra.mxu0 0.0
        %999 = vmatprep.subr.mxu0 0.0
        %1000 = vmatpush1.msra.mxu0 0.0
        %1001 = vmatprep.subr.mxu0 0.0
        %1002 = vmatpush1.msra.mxu0 0.0
        %1003 = vmatprep.subr.mxu0 0.0
        %1004 = vmatpush1.msra.mxu0 0.0
        %1005 = vmatprep.subr.mxu0 0.0
        %1006 = vmatpush1.msra.mxu0 0.0
        %1007 = vmatprep.subr.mxu0 0.0
        %1008 = vmatpush1.msra.mxu0 0.0
        %1009 = vmatprep.subr.mxu0 0.0
        %1010 = vmatpush1.msra.mxu0 0.0
        %1011 = vmatprep.subr.mxu0 0.0
        %1012 = vmatpush1.msra.mxu0 0.0
        %1013 = vmatprep.subr.mxu0 0.0
        %1014 = vmatpush1.msra.mxu0 0.0
        %1015 = vmatprep.subr.mxu0 0.0
        %1016 = vmatpush1.msra.mxu0 0.0
        %1017 = vmatprep.subr.mxu0 0.0
        %1018 = vmatpush1.msra.mxu0 0.0
        %1019 = vmatprep.subr.mxu0 0.0
        %1020 = vmatpush1.msra.mxu0 0.0
        %1021 = vmatprep.subr.mxu0 0.0
        %1022 = vmatpush1.msra.mxu0 0.0
        %1023 = vmatprep.subr.mxu0 0.0
        %1024 = vmatpush1.msra.mxu0 0.0
        %1025 = vmatprep.subr.mxu0 0.0
        %1026 = vmatpush1.msra.mxu0 0.0
        %1027 = vmatprep.subr.mxu0 0.0
        %1028 = vmatpush1.msra.mxu0 0.0
        %1029 = vmatprep.subr.mxu0 0.0
        %1030 = vmatpush1.msra.mxu0 0.0
        %1031 = vmatprep.subr.mxu0 0.0
        %1032 = vmatpush1.msra.mxu0 0.0
        %1033 = vmatprep.subr.mxu0 0.0
        %1034 = vmatpush1.msra.mxu0 0.0
        %1035 = vmatprep.subr.mxu0 0.0
        %1036 = vmatpush1.msra.mxu0 0.0
        %1037 = vmatprep.subr.mxu0 0.0
        %1038 = vmatpush1.msra.mxu0 0.0
        %1039 = vmatprep.subr.mxu0 0.0
        %1040 = vmatpush1.msra.mxu0 0.0
        %1041 = vmatprep.subr.mxu0 0.0
        %1042 = vmatpush1.msra.mxu0 0.0
        %1043 = vmatprep.subr.mxu0 0.0
        %1044 = vmatpush1.msra.mxu0 0.0
        %1045 = vmatprep.subr.mxu0 0.0
        %1046 = vmatpush1.msra.mxu0 0.0
        %1047 = vmatprep.subr.mxu0 0.0
        %1048 = vmatpush1.msra.mxu0 0.0
        %1049 = vmatprep.subr.mxu0 0.0
        %1050 = vmatpush1.msra.mxu0 0.0
        %1051 = vmatprep.subr.mxu0 0.0
        %1052 = vmatpush1.msra.mxu0 0.0
        %1053 = vmatprep.mubr.f32.mxu0 0.0
        %1054 = vmatmul.mubr.f32.gmra.mrb[0].mxu0 %v985
        %v1055 = vpop.f32.mrb[0].mxu0
        %v1056 = vadd.f32 0.0, %v1055
        %v1057 = vpop.f32.mrb[0].mxu0
        %1058 = vdwg.mxu0
        %v1060 = vsel %vm377, %v1056, 0
        %v1063 = vsel %vm254, %v982, 0
        %1065 = vmatprep.subr.mxu0 0.0
        %1066 = vmatpush1.msra.mxu0 %v1063
        %1067 = vmatprep.subr.mxu0 0.0
        %1068 = vmatpush1.msra.mxu0 0.0
        %1069 = vmatprep.subr.mxu0 0.0
        %1070 = vmatpush1.msra.mxu0 0.0
        %1071 = vmatprep.subr.mxu0 0.0
        %1072 = vmatpush1.msra.mxu0 0.0
        %1073 = vmatprep.subr.mxu0 0.0
        %1074 = vmatpush1.msra.mxu0 0.0
        %1075 = vmatprep.subr.mxu0 0.0
        %1076 = vmatpush1.msra.mxu0 0.0
        %1077 = vmatprep.subr.mxu0 0.0
        %1078 = vmatpush1.msra.mxu0 0.0
        %1079 = vmatprep.subr.mxu0 0.0
        %1080 = vmatpush1.msra.mxu0 0.0
        %1081 = vmatprep.subr.mxu0 0.0
        %1082 = vmatpush1.msra.mxu0 0.0
        %1083 = vmatprep.subr.mxu0 0.0
        %1084 = vmatpush1.msra.mxu0 0.0
        %1085 = vmatprep.subr.mxu0 0.0
        %1086 = vmatpush1.msra.mxu0 0.0
        %1087 = vmatprep.subr.mxu0 0.0
        %1088 = vmatpush1.msra.mxu0 0.0
        %1089 = vmatprep.subr.mxu0 0.0
        %1090 = vmatpush1.msra.mxu0 0.0
        %1091 = vmatprep.subr.mxu0 0.0
        %1092 = vmatpush1.msra.mxu0 0.0
        %1093 = vmatprep.subr.mxu0 0.0
        %1094 = vmatpush1.msra.mxu0 0.0
        %1095 = vmatprep.subr.mxu0 0.0
        %1096 = vmatpush1.msra.mxu0 0.0
        %1097 = vmatprep.subr.mxu0 0.0
        %1098 = vmatpush1.msra.mxu0 0.0
        %1099 = vmatprep.subr.mxu0 0.0
        %1100 = vmatpush1.msra.mxu0 0.0
        %1101 = vmatprep.subr.mxu0 0.0
        %1102 = vmatpush1.msra.mxu0 0.0
        %1103 = vmatprep.subr.mxu0 0.0
        %1104 = vmatpush1.msra.mxu0 0.0
        %1105 = vmatprep.subr.mxu0 0.0
        %1106 = vmatpush1.msra.mxu0 0.0
        %1107 = vmatprep.subr.mxu0 0.0
        %1108 = vmatpush1.msra.mxu0 0.0
        %1109 = vmatprep.subr.mxu0 0.0
        %1110 = vmatpush1.msra.mxu0 0.0
        %1111 = vmatprep.subr.mxu0 0.0
        %1112 = vmatpush1.msra.mxu0 0.0
        %1113 = vmatprep.subr.mxu0 0.0
        %1114 = vmatpush1.msra.mxu0 0.0
        %1115 = vmatprep.subr.mxu0 0.0
        %1116 = vmatpush1.msra.mxu0 0.0
        %1117 = vmatprep.subr.mxu0 0.0
        %1118 = vmatpush1.msra.mxu0 0.0
        %1119 = vmatprep.subr.mxu0 0.0
        %1120 = vmatpush1.msra.mxu0 0.0
        %1121 = vmatprep.subr.mxu0 0.0
        %1122 = vmatpush1.msra.mxu0 0.0
        %1123 = vmatprep.subr.mxu0 0.0
        %1124 = vmatpush1.msra.mxu0 0.0
        %1125 = vmatprep.subr.mxu0 0.0
        %1126 = vmatpush1.msra.mxu0 0.0
        %1127 = vmatprep.subr.mxu0 0.0
        %1128 = vmatpush1.msra.mxu0 0.0
        %1129 = vmatprep.mubr.f32.mxu0 0.0
        %1130 = vmatmul.mubr.f32.gmra.mrb[0].mxu0 %v1060
        %v1131 = vpop.f32.mrb[0].mxu0
        %v1132 = vadd.f32 0.0, %v1131
        %v1133 = vpop.f32.mrb[0].mxu0
        %1134 = vdwg.mxu0
        %v1135 = vsub.f32 %v376, %v1132
        %v1136 = vmul.f32 %v1135, 0.5
        %v1137 = vsel %vm377, %v982, 0
        %v1140 = vsel %vm254, %v1136, 0
        %1142 = vmatprep.subr.mxu0 0.0
        %1143 = vmatpush1.msra.mxu0 %v1140
        %1144 = vmatprep.subr.mxu0 0.0
        %1145 = vmatpush1.msra.mxu0 0.0
        %1146 = vmatprep.subr.mxu0 0.0
        %1147 = vmatpush1.msra.mxu0 0.0
        %1148 = vmatprep.subr.mxu0 0.0
        %1149 = vmatpush1.msra.mxu0 0.0
        %1150 = vmatprep.subr.mxu0 0.0
        %1151 = vmatpush1.msra.mxu0 0.0
        %1152 = vmatprep.subr.mxu0 0.0
        %1153 = vmatpush1.msra.mxu0 0.0
        %1154 = vmatprep.subr.mxu0 0.0
        %1155 = vmatpush1.msra.mxu0 0.0
        %1156 = vmatprep.subr.mxu0 0.0
        %1157 = vmatpush1.msra.mxu0 0.0
        %1158 = vmatprep.subr.mxu0 0.0
        %1159 = vmatpush1.msra.mxu0 0.0
        %1160 = vmatprep.subr.mxu0 0.0
        %1161 = vmatpush1.msra.mxu0 0.0
        %1162 = vmatprep.subr.mxu0 0.0
        %1163 = vmatpush1.msra.mxu0 0.0
        %1164 = vmatprep.subr.mxu0 0.0
        %1165 = vmatpush1.msra.mxu0 0.0
        %1166 = vmatprep.subr.mxu0 0.0
        %1167 = vmatpush1.msra.mxu0 0.0
        %1168 = vmatprep.subr.mxu0 0.0
        %1169 = vmatpush1.msra.mxu0 0.0
        %1170 = vmatprep.subr.mxu0 0.0
        %1171 = vmatpush1.msra.mxu0 0.0
        %1172 = vmatprep.subr.mxu0 0.0
        %1173 = vmatpush1.msra.mxu0 0.0
        %1174 = vmatprep.subr.mxu0 0.0
        %1175 = vmatpush1.msra.mxu0 0.0
        %1176 = vmatprep.subr.mxu0 0.0
        %1177 = vmatpush1.msra.mxu0 0.0
        %1178 = vmatprep.subr.mxu0 0.0
        %1179 = vmatpush1.msra.mxu0 0.0
        %1180 = vmatprep.subr.mxu0 0.0
        %1181 = vmatpush1.msra.mxu0 0.0
        %1182 = vmatprep.subr.mxu0 0.0
        %1183 = vmatpush1.msra.mxu0 0.0
        %1184 = vmatprep.subr.mxu0 0.0
        %1185 = vmatpush1.msra.mxu0 0.0
        %1186 = vmatprep.subr.mxu0 0.0
        %1187 = vmatpush1.msra.mxu0 0.0
        %1188 = vmatprep.subr.mxu0 0.0
        %1189 = vmatpush1.msra.mxu0 0.0
        %1190 = vmatprep.subr.mxu0 0.0
        %1191 = vmatpush1.msra.mxu0 0.0
        %1192 = vmatprep.subr.mxu0 0.0
        %1193 = vmatpush1.msra.mxu0 0.0
        %1194 = vmatprep.subr.mxu0 0.0
        %1195 = vmatpush1.msra.mxu0 0.0
        %1196 = vmatprep.subr.mxu0 0.0
        %1197 = vmatpush1.msra.mxu0 0.0
        %1198 = vmatprep.subr.mxu0 0.0
        %1199 = vmatpush1.msra.mxu0 0.0
        %1200 = vmatprep.subr.mxu0 0.0
        %1201 = vmatpush1.msra.mxu0 0.0
        %1202 = vmatprep.subr.mxu0 0.0
        %1203 = vmatpush1.msra.mxu0 0.0
        %1204 = vmatprep.subr.mxu0 0.0
        %1205 = vmatpush1.msra.mxu0 0.0
        %1206 = vmatprep.mubr.f32.mxu0 0.0
        %1207 = vmatmul.mubr.f32.gmra.mrb[0].mxu0 %v1137
        %v1208 = vpop.f32.mrb[0].mxu0
        %v1209 = vadd.f32 0.0, %v1208
        %v1210 = vpop.f32.mrb[0].mxu0
        %1211 = vdwg.mxu0
        %v1212 = vsel %vm377, %v1136, 0
        %v1214 = vsel %vm254, %v1056, 0
        %1216 = vmatprep.subr.mxu0 0.0
        %1217 = vmatpush1.msra.mxu0 %v1214
        %1218 = vmatprep.subr.mxu0 0.0
        %1219 = vmatpush1.msra.mxu0 0.0
        %1220 = vmatprep.subr.mxu0 0.0
        %1221 = vmatpush1.msra.mxu0 0.0
        %1222 = vmatprep.subr.mxu0 0.0
        %1223 = vmatpush1.msra.mxu0 0.0
        %1224 = vmatprep.subr.mxu0 0.0
        %1225 = vmatpush1.msra.mxu0 0.0
        %1226 = vmatprep.subr.mxu0 0.0
        %1227 = vmatpush1.msra.mxu0 0.0
        %1228 = vmatprep.subr.mxu0 0.0
        %1229 = vmatpush1.msra.mxu0 0.0
        %1230 = vmatprep.subr.mxu0 0.0
        %1231 = vmatpush1.msra.mxu0 0.0
        %1232 = vmatprep.subr.mxu0 0.0
        %1233 = vmatpush1.msra.mxu0 0.0
        %1234 = vmatprep.subr.mxu0 0.0
        %1235 = vmatpush1.msra.mxu0 0.0
        %1236 = vmatprep.subr.mxu0 0.0
        %1237 = vmatpush1.msra.mxu0 0.0
        %1238 = vmatprep.subr.mxu0 0.0
        %1239 = vmatpush1.msra.mxu0 0.0
        %1240 = vmatprep.subr.mxu0 0.0
        %1241 = vmatpush1.msra.mxu0 0.0
        %1242 = vmatprep.subr.mxu0 0.0
        %1243 = vmatpush1.msra.mxu0 0.0
        %1244 = vmatprep.subr.mxu0 0.0
        %1245 = vmatpush1.msra.mxu0 0.0
        %1246 = vmatprep.subr.mxu0 0.0
        %1247 = vmatpush1.msra.mxu0 0.0
        %1248 = vmatprep.subr.mxu0 0.0
        %1249 = vmatpush1.msra.mxu0 0.0
        %1250 = vmatprep.subr.mxu0 0.0
        %1251 = vmatpush1.msra.mxu0 0.0
        %1252 = vmatprep.subr.mxu0 0.0
        %1253 = vmatpush1.msra.mxu0 0.0
        %1254 = vmatprep.subr.mxu0 0.0
        %1255 = vmatpush1.msra.mxu0 0.0
        %1256 = vmatprep.subr.mxu0 0.0
        %1257 = vmatpush1.msra.mxu0 0.0
        %1258 = vmatprep.subr.mxu0 0.0
        %1259 = vmatpush1.msra.mxu0 0.0
        %1260 = vmatprep.subr.mxu0 0.0
        %1261 = vmatpush1.msra.mxu0 0.0
        %1262 = vmatprep.subr.mxu0 0.0
        %1263 = vmatpush1.msra.mxu0 0.0
        %1264 = vmatprep.subr.mxu0 0.0
        %1265 = vmatpush1.msra.mxu0 0.0
        %1266 = vmatprep.subr.mxu0 0.0
        %1267 = vmatpush1.msra.mxu0 0.0
        %1268 = vmatprep.subr.mxu0 0.0
        %1269 = vmatpush1.msra.mxu0 0.0
        %1270 = vmatprep.subr.mxu0 0.0
        %1271 = vmatpush1.msra.mxu0 0.0
        %1272 = vmatprep.subr.mxu0 0.0
        %1273 = vmatpush1.msra.mxu0 0.0
        %1274 = vmatprep.subr.mxu0 0.0
        %1275 = vmatpush1.msra.mxu0 0.0
        %1276 = vmatprep.subr.mxu0 0.0
        %1277 = vmatpush1.msra.mxu0 0.0
        %1278 = vmatprep.subr.mxu0 0.0
        %1279 = vmatpush1.msra.mxu0 0.0
        %1280 = vmatprep.mubr.f32.mxu0 0.0
        %1281 = vmatmul.mubr.f32.gmra.mrb[0].mxu0 %v1212
        %v1282 = vpop.f32.mrb[0].mxu0
        %v1283 = vadd.f32 0.0, %v1282
        %v1284 = vpop.f32.mrb[0].mxu0
        %1285 = vdwg.mxu0
        %v1287 = vsel %vm377, %v1283, 0
        %v1290 = vsel %vm254, %v1209, 0
        %1292 = vmatprep.subr.mxu0 0.0
        %1293 = vmatpush1.msra.mxu0 %v1290
        %1294 = vmatprep.subr.mxu0 0.0
        %1295 = vmatpush1.msra.mxu0 0.0
        %1296 = vmatprep.subr.mxu0 0.0
        %1297 = vmatpush1.msra.mxu0 0.0
        %1298 = vmatprep.subr.mxu0 0.0
        %1299 = vmatpush1.msra.mxu0 0.0
        %1300 = vmatprep.subr.mxu0 0.0
        %1301 = vmatpush1.msra.mxu0 0.0
        %1302 = vmatprep.subr.mxu0 0.0
        %1303 = vmatpush1.msra.mxu0 0.0
        %1304 = vmatprep.subr.mxu0 0.0
        %1305 = vmatpush1.msra.mxu0 0.0
        %1306 = vmatprep.subr.mxu0 0.0
        %1307 = vmatpush1.msra.mxu0 0.0
        %1308 = vmatprep.subr.mxu0 0.0
        %1309 = vmatpush1.msra.mxu0 0.0
        %1310 = vmatprep.subr.mxu0 0.0
        %1311 = vmatpush1.msra.mxu0 0.0
        %1312 = vmatprep.subr.mxu0 0.0
        %1313 = vmatpush1.msra.mxu0 0.0
        %1314 = vmatprep.subr.mxu0 0.0
        %1315 = vmatpush1.msra.mxu0 0.0
        %1316 = vmatprep.subr.mxu0 0.0
        %1317 = vmatpush1.msra.mxu0 0.0
        %1318 = vmatprep.subr.mxu0 0.0
        %1319 = vmatpush1.msra.mxu0 0.0
        %1320 = vmatprep.subr.mxu0 0.0
        %1321 = vmatpush1.msra.mxu0 0.0
        %1322 = vmatprep.subr.mxu0 0.0
        %1323 = vmatpush1.msra.mxu0 0.0
        %1324 = vmatprep.subr.mxu0 0.0
        %1325 = vmatpush1.msra.mxu0 0.0
        %1326 = vmatprep.subr.mxu0 0.0
        %1327 = vmatpush1.msra.mxu0 0.0
        %1328 = vmatprep.subr.mxu0 0.0
        %1329 = vmatpush1.msra.mxu0 0.0
        %1330 = vmatprep.subr.mxu0 0.0
        %1331 = vmatpush1.msra.mxu0 0.0
        %1332 = vmatprep.subr.mxu0 0.0
        %1333 = vmatpush1.msra.mxu0 0.0
        %1334 = vmatprep.subr.mxu0 0.0
        %1335 = vmatpush1.msra.mxu0 0.0
        %1336 = vmatprep.subr.mxu0 0.0
        %1337 = vmatpush1.msra.mxu0 0.0
        %1338 = vmatprep.subr.mxu0 0.0
        %1339 = vmatpush1.msra.mxu0 0.0
        %1340 = vmatprep.subr.mxu0 0.0
        %1341 = vmatpush1.msra.mxu0 0.0
        %1342 = vmatprep.subr.mxu0 0.0
        %1343 = vmatpush1.msra.mxu0 0.0
        %1344 = vmatprep.subr.mxu0 0.0
        %1345 = vmatpush1.msra.mxu0 0.0
        %1346 = vmatprep.subr.mxu0 0.0
        %1347 = vmatpush1.msra.mxu0 0.0
        %1348 = vmatprep.subr.mxu0 0.0
        %1349 = vmatpush1.msra.mxu0 0.0
        %1350 = vmatprep.subr.mxu0 0.0
        %1351 = vmatpush1.msra.mxu0 0.0
        %1352 = vmatprep.subr.mxu0 0.0
        %1353 = vmatpush1.msra.mxu0 0.0
        %1354 = vmatprep.subr.mxu0 0.0
        %1355 = vmatpush1.msra.mxu0 0.0
        %1356 = vmatprep.mubr.f32.mxu0 0.0
        %1357 = vmatmul.mubr.f32.gmra.mrb[0].mxu0 %v1287
        %v1358 = vpop.f32.mrb[0].mxu0
        %v1359 = vadd.f32 0.0, %v1358
        %v1360 = vpop.f32.mrb[0].mxu0
        %1361 = vdwg.mxu0
        %v1362 = vsub.f32 %v376, %v1359
        %v1363 = vmul.f32 %v1362, 0.5
        %v1365 = vsel %vm377, %v1363, 0
        %v1367 = vsel %vm254, %v1283, 0
        %1369 = vmatprep.subr.mxu0 0.0
        %1370 = vmatpush1.msra.mxu0 %v1367
        %1371 = vmatprep.subr.mxu0 0.0
        %1372 = vmatpush1.msra.mxu0 0.0
        %1373 = vmatprep.subr.mxu0 0.0
        %1374 = vmatpush1.msra.mxu0 0.0
        %1375 = vmatprep.subr.mxu0 0.0
        %1376 = vmatpush1.msra.mxu0 0.0
        %1377 = vmatprep.subr.mxu0 0.0
        %1378 = vmatpush1.msra.mxu0 0.0
        %1379 = vmatprep.subr.mxu0 0.0
        %1380 = vmatpush1.msra.mxu0 0.0
        %1381 = vmatprep.subr.mxu0 0.0
        %1382 = vmatpush1.msra.mxu0 0.0
        %1383 = vmatprep.subr.mxu0 0.0
        %1384 = vmatpush1.msra.mxu0 0.0
        %1385 = vmatprep.subr.mxu0 0.0
        %1386 = vmatpush1.msra.mxu0 0.0
        %1387 = vmatprep.subr.mxu0 0.0
        %1388 = vmatpush1.msra.mxu0 0.0
        %1389 = vmatprep.subr.mxu0 0.0
        %1390 = vmatpush1.msra.mxu0 0.0
        %1391 = vmatprep.subr.mxu0 0.0
        %1392 = vmatpush1.msra.mxu0 0.0
        %1393 = vmatprep.subr.mxu0 0.0
        %1394 = vmatpush1.msra.mxu0 0.0
        %1395 = vmatprep.subr.mxu0 0.0
        %1396 = vmatpush1.msra.mxu0 0.0
        %1397 = vmatprep.subr.mxu0 0.0
        %1398 = vmatpush1.msra.mxu0 0.0
        %1399 = vmatprep.subr.mxu0 0.0
        %1400 = vmatpush1.msra.mxu0 0.0
        %1401 = vmatprep.subr.mxu0 0.0
        %1402 = vmatpush1.msra.mxu0 0.0
        %1403 = vmatprep.subr.mxu0 0.0
        %1404 = vmatpush1.msra.mxu0 0.0
        %1405 = vmatprep.subr.mxu0 0.0
        %1406 = vmatpush1.msra.mxu0 0.0
        %1407 = vmatprep.subr.mxu0 0.0
        %1408 = vmatpush1.msra.mxu0 0.0
        %1409 = vmatprep.subr.mxu0 0.0
        %1410 = vmatpush1.msra.mxu0 0.0
        %1411 = vmatprep.subr.mxu0 0.0
        %1412 = vmatpush1.msra.mxu0 0.0
        %1413 = vmatprep.subr.mxu0 0.0
        %1414 = vmatpush1.msra.mxu0 0.0
        %1415 = vmatprep.subr.mxu0 0.0
        %1416 = vmatpush1.msra.mxu0 0.0
        %1417 = vmatprep.subr.mxu0 0.0
        %1418 = vmatpush1.msra.mxu0 0.0
        %1419 = vmatprep.subr.mxu0 0.0
        %1420 = vmatpush1.msra.mxu0 0.0
        %1421 = vmatprep.subr.mxu0 0.0
        %1422 = vmatpush1.msra.mxu0 0.0
        %1423 = vmatprep.subr.mxu0 0.0
        %1424 = vmatpush1.msra.mxu0 0.0
        %1425 = vmatprep.subr.mxu0 0.0
        %1426 = vmatpush1.msra.mxu0 0.0
        %1427 = vmatprep.subr.mxu0 0.0
        %1428 = vmatpush1.msra.mxu0 0.0
        %1429 = vmatprep.subr.mxu0 0.0
        %1430 = vmatpush1.msra.mxu0 0.0
        %1431 = vmatprep.subr.mxu0 0.0
        %1432 = vmatpush1.msra.mxu0 0.0
        %1433 = vmatprep.mubr.f32.mxu0 0.0
        %1434 = vmatmul.mubr.f32.gmra.mrb[0].mxu0 %v1365
        %v1435 = vpop.f32.mrb[0].mxu0
        %v1436 = vadd.f32 0.0, %v1435
        %v1437 = vpop.f32.mrb[0].mxu0
        %1438 = vdwg.mxu0
        %v1439 = vld [vmem:[#allocation2] sm:$0xf]
        %v1440 = vmul.f32 %v1439, 0.01754386
        %1441 = vst.msk [vmem:[%s2] sm:$0xf] %vm261, %v1440
        %v1442 = vstv %s372
        %v1443 = vrsqrt.pop %v1442
        %s1444 = vtos %v1443
        %v1445 = vstv %s1444
        %v1446 = vmul.f32 %v1436, %v1445
        %1447 = vst.msk [vmem:[%s3] sm:$0xf] %vm335, %v1446
      $region36: #{channel_deconv_forward.2} parent=27 // pred_fallthru
        _
      // Predicated region
      $region37: #{channel_deconv_forward.2} parent=27 // pred_check
        %p1448 = pneg %p96
      $region38: #{channel_deconv_forward.2} parent=27 // pred_check_branch
        %1450 = sbr.rel (%p1448) target = $region40
      $region39: #{channel_deconv_forward.2} parent=27 // pred_region
        _
      $region40: #{channel_deconv_forward.2} parent=27 // pred_fallthru
        _
      // Predicated region
      $region41: #{channel_deconv_forward.2} parent=27 // pred_check
        %p1451 = pneg %p117
      $region42: #{channel_deconv_forward.2} parent=27 // pred_check_branch
        %1453 = sbr.rel (%p1451) target = $region44
      $region43: #{channel_deconv_forward.2} parent=27 // pred_region
        _
      $region44: #{channel_deconv_forward.2} parent=27 // pred_fallthru
        _
      // Predicated region
      $region45: #{channel_deconv_forward.2} parent=27 // pred_check
        %p1454 = pneg %p96
      $region46: #{channel_deconv_forward.2} parent=27 // pred_check_branch
        %1456 = sbr.rel (%p1454) target = $region48
      $region47: #{channel_deconv_forward.2} parent=27 // pred_region
        _
      $region48: #{channel_deconv_forward.2} parent=27 // pred_fallthru
        _
      // Predicated region
      $region49: #{channel_deconv_forward.2} parent=27 // pred_check
        %p1457 = pneg %p117
      $region50: #{channel_deconv_forward.2} parent=27 // pred_check_branch
        %1459 = sbr.rel (%p1457) target = $region52
      $region51: #{channel_deconv_forward.2} parent=27 // pred_region
        _
      $region52: #{channel_deconv_forward.2} parent=27 // pred_fallthru
        _
    $region28: #{channel_deconv_forward.2} parent=5 // pred_fallthru
      _
    %p1460 = scmp.le.s32.totalorder 2, %s10
    // Predicated region
    $region53: #{channel_deconv_forward.2} parent=5 // pred_check
      %p1461 = pneg %p1460
    $region54: #{channel_deconv_forward.2} parent=5 // pred_check_branch
      %1463 = sbr.rel (%p1461) target = $region56
    $region55: #{channel_deconv_forward.2} parent=5 // pred_region
      %s1464 = ssub.s32 %s10, 2
    $region56: #{channel_deconv_forward.2} parent=5 // pred_fallthru
      _
  $region6: #{channel_deconv_forward.2} parent=0 // loop_footer
    %s14 = sadd.s32 1, %s10
  $region7: #{channel_deconv_forward.2} parent=0 // loop_footer_branch
    %9 = sbr.rel target = $region3
  $region8: #{channel_deconv_forward.2} parent=0 // loop_exit
    _

</llo_original>
